<compile_context>
chip_gen: v5e
topology: v5e:2x2
jax: 0.10.0
libtpu: 0.0.40
codegen_flags: <defaults>
</compile_context>

<pallas_src>
import functools

import jax
import jax.numpy as jnp
from jax import lax
from jax.experimental import pallas as pl
from jax.experimental.pallas import tpu as pltpu


# Order of (pre-packed) parameters passed to the kernel after the 3 data inputs.
_PARAM_ORDER = ("vt", "q0s", "v0", "s_tok",
                "w_in", "b_in", "wkv", "wu", "bu",
                "g1", "be1", "w1", "b1", "w2", "b2", "g2", "be2",
                "wo1", "bo1", "wo2", "bo2")


def _critic_kernel(embs_ref, em_ref, am_ref,
                   vt_ref, q0s_ref, v0_ref, stok_ref,
                   w_in_ref, b_in_ref, wkv_ref, wu_ref, bu_ref,
                   g1_ref, be1_ref, w1_ref, b1_ref, w2_ref, b2_ref,
                   g2_ref, be2_ref,
                   wo1_ref, bo1_ref, wo2_ref, bo2_ref,
                   out_ref, *, bb, n, hidden):
    """One grid step = BB batches; computes only the value-token output row."""
    H = hidden
    f32 = jnp.float32

    # input_net: Linear + ReLU on all BB*N entity rows at once.
    x = embs_ref[...].astype(f32)                                       # (BB*N, in_dim)
    xh = jnp.maximum(
        jnp.dot(x, w_in_ref[...], preferred_element_type=f32) + b_in_ref[...],
        0.0)                                                            # (BB*N, H)

    # Fused key/value projection of the entity rows.
    kv = jnp.dot(xh, wkv_ref[...], preferred_element_type=f32)          # (BB*N, 2H)
    k3 = kv[:, :H].reshape(bb, n, H)                                    # (BB, N, H)
    v3 = kv[:, H:].reshape(bb, n, H)                                    # (BB, N, H)

    # Single-head attention, query = value token only (row 0).
    # q0s already carries the full H**-0.5 scale (folded in the wrapper).
    q3 = jnp.broadcast_to(q0s_ref[...][None], (bb, 1, H))               # (BB, 1, H)
    s = jnp.einsum('bqh,bnh->bqn', q3, k3, preferred_element_type=f32)  # (BB, 1, N)
    # Key-side entity mask. The query-side mask only affects rows != 0, which are
    # discarded downstream (only the value-token row is consumed), and row 0's
    # query mask is always 1 — so this matches the torch outer q/k mask exactly.
    s = jnp.where(em_ref[...] > 0.0, s, f32(-1e9))
    s_tok = stok_ref[...]                                               # (1, 1) value-token self score
    m = jnp.maximum(jnp.max(s, axis=-1, keepdims=True), s_tok)          # (BB, 1, 1)
    p = jnp.exp(s - m)                                                  # (BB, 1, N)
    p_tok = jnp.exp(s_tok - m)                                          # (BB, 1, 1)
    denom = p_tok + jnp.sum(p, axis=-1, keepdims=True)                  # (BB, 1, 1)
    inv = pl.reciprocal(denom, approx=False)                            # exact, keeps f32 parity
    att = (p_tok * v0_ref[...]
           + jnp.einsum('bqn,bnh->bqh', p, v3, preferred_element_type=f32)) * inv
    att = att.reshape(bb, H)                                            # (BB, H)
    att = jnp.dot(att, wu_ref[...], preferred_element_type=f32) + bu_ref[...]

    def layer_norm(z, g, b):
        mu = jnp.mean(z, axis=-1, keepdims=True)
        var = jnp.mean((z - mu) ** 2, axis=-1, keepdims=True)
        return (z - mu) * lax.rsqrt(var + 1e-5) * g + b

    # Residual for row 0 is the value token itself.
    x1 = layer_norm(att + vt_ref[...], g1_ref[...], be1_ref[...])       # (BB, H)
    ff = jnp.dot(
        jnp.maximum(jnp.dot(x1, w1_ref[...], preferred_element_type=f32)
                    + b1_ref[...], 0.0),
        w2_ref[...], preferred_element_type=f32) + b2_ref[...]
    x2 = layer_norm(ff + x1, g2_ref[...], be2_ref[...])                 # (BB, H)

    # output_net: Linear -> ReLU -> Linear, one value per batch.
    h1 = jnp.maximum(jnp.dot(x2, wo1_ref[...], preferred_element_type=f32)
                     + bo1_ref[...], 0.0)
    val = jnp.dot(h1, wo2_ref[...], preferred_element_type=f32) + bo2_ref[...]   # (BB, 1)

    # Lane-dense (BB, N) output: broadcast the batch value over agents, mask it.
    out_ref[...] = val * am_ref[...]


def _pack_params(params):
    """Hoist all value-token / scale math out of the kernel; fuse wk|wv."""
    H = params["w_in"].shape[1]
    scale = jnp.float32(H) ** jnp.float32(-0.5)      # (H**-0.25 on q) * (H**-0.25 on k)
    vt = params["value_token"].reshape(1, H).astype(jnp.float32)
    q0s = (vt @ params["wq"]) * scale                # (1, H), scale folded in
    k0 = vt @ params["wk"]                           # (1, H)
    v0 = vt @ params["wv"]                           # (1, H)
    s_tok = jnp.sum(q0s * k0).reshape(1, 1)          # value-token self-attention score
    wkv = jnp.concatenate([params["wk"], params["wv"]], axis=1)   # (H, 2H)
    packed = {"vt": vt, "q0s": q0s, "v0": v0, "s_tok": s_tok, "wkv": wkv}
    for name in ("w_in", "b_in", "wu", "bu", "g1", "be1", "w1", "b1",
                 "w2", "b2", "g2", "be2", "wo1", "bo1", "wo2", "bo2"):
        packed[name] = params[name]
    return packed


def entity_ppo_critic(params, embs, entity_mask, agent_mask, *, block_b=8):
    orig_ndim = embs.ndim
    if orig_ndim == 4:
        T, B0, N, F = embs.shape
        embs = embs.reshape(T * B0, N, F)
        entity_mask = entity_mask.reshape(T * B0, N)
        agent_mask = agent_mask.reshape(T * B0, N)
    elif orig_ndim != 3:
        raise NotImplementedError
    B, N, in_dim = embs.shape
    H = params["w_in"].shape[1]

    # Batch blocking (BB batches per grid step); pad B to a multiple of BB.
    BB = int(block_b)
    Bp = pl.cdiv(B, BB) * BB
    pad = Bp - B
    if pad:
        embs = jnp.pad(embs, ((0, pad), (0, 0), (0, 0)))
        entity_mask = jnp.pad(entity_mask, ((0, pad), (0, 0)))
        agent_mask = jnp.pad(agent_mask, ((0, pad), (0, 0)))

    # 2-D row-blocked view for the input_net matmul; no dtype cast here
    # (the cast — if any — happens in-kernel after the DMA).
    embs2 = embs.reshape(Bp * N, in_dim)
    em3 = entity_mask.reshape(Bp, 1, N).astype(jnp.float32)
    am2 = agent_mask.reshape(Bp, N).astype(jnp.float32)

    packed = _pack_params(params)
    param_list = [packed[name] for name in _PARAM_ORDER]
    param_specs = [pl.BlockSpec(p.shape, lambda i: (0, 0)) for p in param_list]

    out = pl.pallas_call(
        functools.partial(_critic_kernel, bb=BB, n=N, hidden=H),
        grid=(Bp // BB,),
        in_specs=[pl.BlockSpec((BB * N, in_dim), lambda i: (i, 0)),
                  pl.BlockSpec((BB, 1, N), lambda i: (i, 0, 0)),
                  pl.BlockSpec((BB, N), lambda i: (i, 0)),
                  *param_specs],
        out_specs=pl.BlockSpec((BB, N), lambda i: (i, 0)),
        out_shape=jax.ShapeDtypeStruct((Bp, N), jnp.float32),
        compiler_params=pltpu.CompilerParams(dimension_semantics=("parallel",)),
    )(embs2, em3, am2, *param_list)

    value = out[:B].reshape(B, N, 1)
    if orig_ndim == 4:
        value = value.reshape(T, B0, N, 1)
    return value


def init_params(key, in_dim, hidden):
    ks = jax.random.split(key, 16)
    H = hidden

    def linw(k, fin, fout):
        bound = 1.0 / jnp.sqrt(jnp.float32(fin))
        return jax.random.uniform(k, (fin, fout), jnp.float32, -bound, bound)

    def linb(k, fin, fout):
        bound = 1.0 / jnp.sqrt(jnp.float32(fin))
        return jax.random.uniform(k, (1, fout), jnp.float32, -bound, bound)

    return {
        # nn.Parameter(torch.zeros(1,1,H)) — initialized with small random values
        # (deterministic) to keep the test non-degenerate.
        "value_token": 0.02 * jax.random.normal(ks[15], (1, H), jnp.float32),
        "w_in": linw(ks[0], in_dim, H), "b_in": linb(ks[1], in_dim, H),
        "wq": linw(ks[2], H, H), "wk": linw(ks[3], H, H), "wv": linw(ks[4], H, H),
        "wu": linw(ks[5], H, H), "bu": linb(ks[6], H, H),
        "g1": jnp.ones((1, H), jnp.float32), "be1": jnp.zeros((1, H), jnp.float32),
        "w1": linw(ks[7], H, 2 * H), "b1": linb(ks[8], H, 2 * H),
        "w2": linw(ks[9], 2 * H, H), "b2": linb(ks[10], 2 * H, H),
        "g2": jnp.ones((1, H), jnp.float32), "be2": jnp.zeros((1, H), jnp.float32),
        "wo1": linw(ks[11], H, H), "bo1": linb(ks[12], H, H),
        "wo2": linw(ks[13], H, 1), "bo2": linb(ks[14], H, 1),
    }


def reference(params, embs, entity_mask, agent_mask):
    """Pure-JAX mirror of the PyTorch forward (3-D path, full outer q/k mask)."""
    B, N, _ = embs.shape
    H = params["w_in"].shape[1]
    xh = jax.nn.relu(embs @ params["w_in"] + params["b_in"])
    vt = jnp.broadcast_to(params["value_token"][None], (B, 1, H))
    seq = jnp.concatenate([vt, xh], axis=1)
    mask = jnp.concatenate([jnp.ones((B, 1), jnp.float32), entity_mask], axis=1)
    scale = jnp.float32(H) ** -0.25
    q = seq @ params["wq"] * scale
    k = seq @ params["wk"] * scale
    v = seq @ params["wv"]
    dot = jnp.einsum("bqe,bke->bqk", q, k)
    m2 = mask[:, :, None] * mask[:, None, :]
    dot = jnp.where(m2 > 0, dot, jnp.float32(-1e9))
    p = jax.nn.softmax(dot, axis=-1)
    att = jnp.einsum("bqk,bke->bqe", p, v) @ params["wu"] + params["bu"]

    def ln(z, g, b):
        mu = z.mean(-1, keepdims=True)
        var = ((z - mu) ** 2).mean(-1, keepdims=True)
        return (z - mu) / jnp.sqrt(var + 1e-5) * g + b

    x1 = ln(att + seq, params["g1"], params["be1"])
    ff = jax.nn.relu(x1 @ params["w1"] + params["b1"]) @ params["w2"] + params["b2"]
    x2 = ln(ff + x1, params["g2"], params["be2"])
    tok0 = x2[:, 0, :]
    h1 = jax.nn.relu(tok0 @ params["wo1"] + params["bo1"])
    val = h1 @ params["wo2"] + params["bo2"]
    return jnp.broadcast_to(val[:, None, :], (B, N, 1)) * agent_mask[..., None]


if __name__ == "__main__":
    key = jax.random.PRNGKey(0)
    k1, k2, k3, kp = jax.random.split(key, 4)
    B, N, in_dim, H = 2, 8, 16, 32

    embs = jax.random.normal(k1, (B, N, in_dim), jnp.float32)
    entity_mask = (jax.random.uniform(k2, (B, N)) > 0.3).astype(jnp.float32)
    agent_mask = (jax.random.uniform(k3, (B, N)) > 0.3).astype(jnp.float32)
    params = init_params(kp, in_dim, H)

    value = jax.block_until_ready(entity_ppo_critic(params, embs, entity_mask, agent_mask))
    assert value.shape == (B, N, 1)
    ref = reference(params, embs, entity_mask, agent_mask)
    assert jnp.allclose(value, ref, atol=2e-4, rtol=1e-3), (value, ref)

    # 4-D path: (seq_len, batch, n_entities, in_dim)
    T = 3
    embs4 = jax.random.normal(k1, (T, B, N, in_dim), jnp.float32)
    em4 = (jax.random.uniform(k2, (T, B, N)) > 0.3).astype(jnp.float32)
    am4 = (jax.random.uniform(k3, (T, B, N)) > 0.3).astype(jnp.float32)
    value4 = jax.block_until_ready(entity_ppo_critic(params, embs4, em4, am4))
    assert value4.shape == (T, B, N, 1)
    ref4 = reference(params, embs4.reshape(T * B, N, in_dim),
                     em4.reshape(T * B, N), am4.reshape(T * B, N)).reshape(T, B, N, 1)
    assert jnp.allclose(value4, ref4, atol=2e-4, rtol=1e-3), (value4, ref4)

    print("KERNEL_OK")
</pallas_src>

<mosaic_0001>
module attributes {stable_mosaic.version = 11 : i64} {
  func.func @_critic_kernel(%arg0: i32, %arg1: memref<64x16xf32, #tpu.memory_space<vmem>>, %arg2: memref<8x1x8xf32, #tpu.memory_space<vmem>>, %arg3: memref<8x8xf32, #tpu.memory_space<vmem>>, %arg4: memref<1x32xf32, #tpu.memory_space<vmem>>, %arg5: memref<1x32xf32, #tpu.memory_space<vmem>>, %arg6: memref<1x32xf32, #tpu.memory_space<vmem>>, %arg7: memref<1x1xf32, #tpu.memory_space<vmem>>, %arg8: memref<16x32xf32, #tpu.memory_space<vmem>>, %arg9: memref<1x32xf32, #tpu.memory_space<vmem>>, %arg10: memref<32x64xf32, #tpu.memory_space<vmem>>, %arg11: memref<32x32xf32, #tpu.memory_space<vmem>>, %arg12: memref<1x32xf32, #tpu.memory_space<vmem>>, %arg13: memref<1x32xf32, #tpu.memory_space<vmem>>, %arg14: memref<1x32xf32, #tpu.memory_space<vmem>>, %arg15: memref<32x64xf32, #tpu.memory_space<vmem>>, %arg16: memref<1x64xf32, #tpu.memory_space<vmem>>, %arg17: memref<64x32xf32, #tpu.memory_space<vmem>>, %arg18: memref<1x32xf32, #tpu.memory_space<vmem>>, %arg19: memref<1x32xf32, #tpu.memory_space<vmem>>, %arg20: memref<1x32xf32, #tpu.memory_space<vmem>>, %arg21: memref<32x32xf32, #tpu.memory_space<vmem>>, %arg22: memref<1x32xf32, #tpu.memory_space<vmem>>, %arg23: memref<32x1xf32, #tpu.memory_space<vmem>>, %arg24: memref<1x1xf32, #tpu.memory_space<vmem>>, %arg25: memref<8x8xf32, #tpu.memory_space<vmem>>) attributes {dimension_semantics = [#tpu.dimension_semantics<parallel>], iteration_bounds = array<i64: 1>, scalar_prefetch = 0 : i64, scratch_operands = 0 : i64, tpu.core_type = #tpu.core_type<tc>, window_params = [{transform_indices = @transform_0, window_bounds = array<i64: 64, 16>}, {transform_indices = @transform_1, window_bounds = array<i64: 8, 1, 8>}, {transform_indices = @transform_2, window_bounds = array<i64: 8, 8>}, {pipeline_mode = #tpu.pipeline_mode<synchronous>, transform_indices = @transform_3, window_bounds = array<i64: 1, 32>}, {pipeline_mode = #tpu.pipeline_mode<synchronous>, transform_indices = @transform_4, window_bounds = array<i64: 1, 32>}, {pipeline_mode = #tpu.pipeline_mode<synchronous>, transform_indices = @transform_5, window_bounds = array<i64: 1, 32>}, {pipeline_mode = #tpu.pipeline_mode<synchronous>, transform_indices = @transform_6, window_bounds = array<i64: 1, 1>}, {pipeline_mode = #tpu.pipeline_mode<synchronous>, transform_indices = @transform_7, window_bounds = array<i64: 16, 32>}, {pipeline_mode = #tpu.pipeline_mode<synchronous>, transform_indices = @transform_8, window_bounds = array<i64: 1, 32>}, {pipeline_mode = #tpu.pipeline_mode<synchronous>, transform_indices = @transform_9, window_bounds = array<i64: 32, 64>}, {pipeline_mode = #tpu.pipeline_mode<synchronous>, transform_indices = @transform_10, window_bounds = array<i64: 32, 32>}, {pipeline_mode = #tpu.pipeline_mode<synchronous>, transform_indices = @transform_11, window_bounds = array<i64: 1, 32>}, {pipeline_mode = #tpu.pipeline_mode<synchronous>, transform_indices = @transform_12, window_bounds = array<i64: 1, 32>}, {pipeline_mode = #tpu.pipeline_mode<synchronous>, transform_indices = @transform_13, window_bounds = array<i64: 1, 32>}, {pipeline_mode = #tpu.pipeline_mode<synchronous>, transform_indices = @transform_14, window_bounds = array<i64: 32, 64>}, {pipeline_mode = #tpu.pipeline_mode<synchronous>, transform_indices = @transform_15, window_bounds = array<i64: 1, 64>}, {pipeline_mode = #tpu.pipeline_mode<synchronous>, transform_indices = @transform_16, window_bounds = array<i64: 64, 32>}, {pipeline_mode = #tpu.pipeline_mode<synchronous>, transform_indices = @transform_17, window_bounds = array<i64: 1, 32>}, {pipeline_mode = #tpu.pipeline_mode<synchronous>, transform_indices = @transform_18, window_bounds = array<i64: 1, 32>}, {pipeline_mode = #tpu.pipeline_mode<synchronous>, transform_indices = @transform_19, window_bounds = array<i64: 1, 32>}, {pipeline_mode = #tpu.pipeline_mode<synchronous>, transform_indices = @transform_20, window_bounds = array<i64: 32, 32>}, {pipeline_mode = #tpu.pipeline_mode<synchronous>, transform_indices = @transform_21, window_bounds = array<i64: 1, 32>}, {pipeline_mode = #tpu.pipeline_mode<synchronous>, transform_indices = @transform_22, window_bounds = array<i64: 32, 1>}, {pipeline_mode = #tpu.pipeline_mode<synchronous>, transform_indices = @transform_23, window_bounds = array<i64: 1, 1>}, {transform_indices = @transform_24, window_bounds = array<i64: 8, 8>}]} {
    %c0 = arith.constant 0 : index
    %c0_0 = arith.constant 0 : index
    %0 = vector.load %arg1[%c0, %c0_0] : memref<64x16xf32, #tpu.memory_space<vmem>>, vector<64x16xf32>
    %c0_1 = arith.constant 0 : index
    %c0_2 = arith.constant 0 : index
    %1 = vector.load %arg8[%c0_1, %c0_2] : memref<16x32xf32, #tpu.memory_space<vmem>>, vector<16x32xf32>
    %cst = arith.constant dense<0.000000e+00> : vector<64x32xf32>
    %2 = tpu.matmul %0, %1, %cst {dimension_numbers = #tpu.dot_dimension_numbers<[1], [0], [0], [1], [0, 0, 1, 1], [], []>} : vector<64x16xf32>, vector<16x32xf32>, vector<64x32xf32> -> vector<64x32xf32>
    %c0_3 = arith.constant 0 : index
    %c0_4 = arith.constant 0 : index
    %3 = vector.load %arg9[%c0_3, %c0_4] : memref<1x32xf32, #tpu.memory_space<vmem>>, vector<1x32xf32>
    %4 = vector.broadcast %3 : vector<1x32xf32> to vector<64x32xf32>
    %5 = arith.addf %2, %4 : vector<64x32xf32>
    %cst_5 = arith.constant 0.000000e+00 : f32
    %6 = vector.broadcast %cst_5 : f32 to vector<64x32xf32>
    %7 = arith.maximumf %5, %6 : vector<64x32xf32>
    %c0_6 = arith.constant 0 : index
    %c0_7 = arith.constant 0 : index
    %8 = vector.load %arg10[%c0_6, %c0_7] : memref<32x64xf32, #tpu.memory_space<vmem>>, vector<32x64xf32>
    %cst_8 = arith.constant dense<0.000000e+00> : vector<64x64xf32>
    %9 = tpu.matmul %7, %8, %cst_8 {dimension_numbers = #tpu.dot_dimension_numbers<[1], [0], [0], [1], [0, 0, 1, 1], [], []>} : vector<64x32xf32>, vector<32x64xf32>, vector<64x64xf32> -> vector<64x64xf32>
    %10 = vector.extract_strided_slice %9 {offsets = [0, 0], sizes = [64, 32], strides = [1, 1]} : vector<64x64xf32> to vector<64x32xf32>
    %11 = vector.shape_cast %10 : vector<64x32xf32> to vector<8x8x32xf32>
    %12 = vector.extract_strided_slice %9 {offsets = [0, 32], sizes = [64, 32], strides = [1, 1]} : vector<64x64xf32> to vector<64x32xf32>
    %13 = vector.shape_cast %12 : vector<64x32xf32> to vector<8x8x32xf32>
    %c0_9 = arith.constant 0 : index
    %c0_10 = arith.constant 0 : index
    %14 = vector.load %arg5[%c0_9, %c0_10] : memref<1x32xf32, #tpu.memory_space<vmem>>, vector<1x32xf32>
    %15 = vector.shape_cast %14 : vector<1x32xf32> to vector<1x1x32xf32>
    %16 = vector.shape_cast %15 : vector<1x1x32xf32> to vector<1x1x32xf32>
    %17 = vector.broadcast %16 : vector<1x1x32xf32> to vector<8x1x32xf32>
    "tpu.trace_start"() <{level = 10 : i32, message = "bqh,bnh->bqn"}> : () -> ()
    %cst_11 = arith.constant dense<0.000000e+00> : vector<8x1x8xf32>
    %18 = tpu.matmul %17, %11, %cst_11 {dimension_numbers = #tpu.dot_dimension_numbers<[2], [2], [1], [1], [0, 0, 0, 1, 1, 1], [0], [0]>} : vector<8x1x32xf32>, vector<8x8x32xf32>, vector<8x1x8xf32> -> vector<8x1x8xf32>
    "tpu.trace_stop"() : () -> ()
    %c0_12 = arith.constant 0 : index
    %c0_13 = arith.constant 0 : index
    %c0_14 = arith.constant 0 : index
    %19 = vector.load %arg2[%c0_12, %c0_13, %c0_14] : memref<8x1x8xf32, #tpu.memory_space<vmem>>, vector<8x1x8xf32>
    %cst_15 = arith.constant 0.000000e+00 : f32
    %20 = vector.broadcast %cst_15 : f32 to vector<8x1x8xf32>
    %21 = arith.cmpf ogt, %19, %20 : vector<8x1x8xf32>
    %cst_16 = arith.constant -1.000000e+09 : f32
    %22 = vector.broadcast %cst_16 : f32 to vector<8x1x8xf32>
    %23 = arith.select %21, %18, %22 : vector<8x1x8xi1>, vector<8x1x8xf32>
    %c0_17 = arith.constant 0 : index
    %c0_18 = arith.constant 0 : index
    %24 = vector.load %arg7[%c0_17, %c0_18] : memref<1x1xf32, #tpu.memory_space<vmem>>, vector<1x1xf32>
    %cst_19 = arith.constant dense<0xFF800000> : vector<8x1xf32>
    %25 = vector.multi_reduction <maximumf>, %23, %cst_19 [2] : vector<8x1x8xf32> to vector<8x1xf32>
    %26 = vector.shape_cast %25 : vector<8x1xf32> to vector<8x1x1xf32>
    %27 = vector.shape_cast %24 : vector<1x1xf32> to vector<1x1x1xf32>
    %28 = vector.broadcast %27 : vector<1x1x1xf32> to vector<8x1x1xf32>
    %29 = arith.maximumf %26, %28 : vector<8x1x1xf32>
    %30 = vector.broadcast %29 : vector<8x1x1xf32> to vector<8x1x8xf32>
    %31 = arith.subf %23, %30 : vector<8x1x8xf32>
    %32 = math.exp %31 : vector<8x1x8xf32>
    %33 = vector.shape_cast %24 : vector<1x1xf32> to vector<1x1x1xf32>
    %34 = vector.broadcast %33 : vector<1x1x1xf32> to vector<8x1x1xf32>
    %35 = arith.subf %34, %29 : vector<8x1x1xf32>
    %36 = math.exp %35 : vector<8x1x1xf32>
    %cst_20 = arith.constant dense<0.000000e+00> : vector<8x1xf32>
    %37 = vector.multi_reduction <add>, %32, %cst_20 [2] : vector<8x1x8xf32> to vector<8x1xf32>
    %38 = vector.shape_cast %37 : vector<8x1xf32> to vector<8x1x1xf32>
    %39 = arith.addf %36, %38 : vector<8x1x1xf32>
    %40 = tpu.reciprocal %39 : vector<8x1x1xf32> -> vector<8x1x1xf32>
    %c0_21 = arith.constant 0 : index
    %c0_22 = arith.constant 0 : index
    %41 = vector.load %arg6[%c0_21, %c0_22] : memref<1x32xf32, #tpu.memory_space<vmem>>, vector<1x32xf32>
    %42 = vector.shape_cast %41 : vector<1x32xf32> to vector<1x1x32xf32>
    %43 = vector.broadcast %36 : vector<8x1x1xf32> to vector<8x1x32xf32>
    %44 = vector.broadcast %42 : vector<1x1x32xf32> to vector<8x1x32xf32>
    %45 = arith.mulf %43, %44 : vector<8x1x32xf32>
    "tpu.trace_start"() <{level = 10 : i32, message = "bqn,bnh->bqh"}> : () -> ()
    %cst_23 = arith.constant dense<0.000000e+00> : vector<8x1x32xf32>
    %46 = tpu.matmul %32, %13, %cst_23 {dimension_numbers = #tpu.dot_dimension_numbers<[2], [1], [1], [2], [0, 0, 0, 1, 1, 2], [0], [0]>} : vector<8x1x8xf32>, vector<8x8x32xf32>, vector<8x1x32xf32> -> vector<8x1x32xf32>
    "tpu.trace_stop"() : () -> ()
    %47 = arith.addf %45, %46 : vector<8x1x32xf32>
    %48 = vector.broadcast %40 : vector<8x1x1xf32> to vector<8x1x32xf32>
    %49 = arith.mulf %47, %48 : vector<8x1x32xf32>
    %50 = vector.shape_cast %49 : vector<8x1x32xf32> to vector<8x32xf32>
    %c0_24 = arith.constant 0 : index
    %c0_25 = arith.constant 0 : index
    %51 = vector.load %arg11[%c0_24, %c0_25] : memref<32x32xf32, #tpu.memory_space<vmem>>, vector<32x32xf32>
    %cst_26 = arith.constant dense<0.000000e+00> : vector<8x32xf32>
    %52 = tpu.matmul %50, %51, %cst_26 {dimension_numbers = #tpu.dot_dimension_numbers<[1], [0], [0], [1], [0, 0, 1, 1], [], []>} : vector<8x32xf32>, vector<32x32xf32>, vector<8x32xf32> -> vector<8x32xf32>
    %c0_27 = arith.constant 0 : index
    %c0_28 = arith.constant 0 : index
    %53 = vector.load %arg12[%c0_27, %c0_28] : memref<1x32xf32, #tpu.memory_space<vmem>>, vector<1x32xf32>
    %54 = vector.broadcast %53 : vector<1x32xf32> to vector<8x32xf32>
    %55 = arith.addf %52, %54 : vector<8x32xf32>
    %c0_29 = arith.constant 0 : index
    %c0_30 = arith.constant 0 : index
    %56 = vector.load %arg4[%c0_29, %c0_30] : memref<1x32xf32, #tpu.memory_space<vmem>>, vector<1x32xf32>
    %57 = vector.broadcast %56 : vector<1x32xf32> to vector<8x32xf32>
    %58 = arith.addf %55, %57 : vector<8x32xf32>
    %c0_31 = arith.constant 0 : index
    %c0_32 = arith.constant 0 : index
    %59 = vector.load %arg13[%c0_31, %c0_32] : memref<1x32xf32, #tpu.memory_space<vmem>>, vector<1x32xf32>
    %c0_33 = arith.constant 0 : index
    %c0_34 = arith.constant 0 : index
    %60 = vector.load %arg14[%c0_33, %c0_34] : memref<1x32xf32, #tpu.memory_space<vmem>>, vector<1x32xf32>
    %cst_35 = arith.constant dense<0.000000e+00> : vector<8xf32>
    %61 = vector.multi_reduction <add>, %58, %cst_35 [1] : vector<8x32xf32> to vector<8xf32>
    %62 = vector.shape_cast %61 : vector<8xf32> to vector<8x1xf32>
    %cst_36 = arith.constant 3.200000e+01 : f32
    %63 = vector.broadcast %cst_36 : f32 to vector<8x1xf32>
    %64 = arith.divf %62, %63 : vector<8x1xf32>
    %65 = vector.broadcast %64 : vector<8x1xf32> to vector<8x32xf32>
    %66 = arith.subf %58, %65 : vector<8x32xf32>
    %67 = arith.mulf %66, %66 : vector<8x32xf32>
    %cst_37 = arith.constant dense<0.000000e+00> : vector<8xf32>
    %68 = vector.multi_reduction <add>, %67, %cst_37 [1] : vector<8x32xf32> to vector<8xf32>
    %69 = vector.shape_cast %68 : vector<8xf32> to vector<8x1xf32>
    %cst_38 = arith.constant 3.200000e+01 : f32
    %70 = vector.broadcast %cst_38 : f32 to vector<8x1xf32>
    %71 = arith.divf %69, %70 : vector<8x1xf32>
    %72 = vector.broadcast %64 : vector<8x1xf32> to vector<8x32xf32>
    %73 = arith.subf %58, %72 : vector<8x32xf32>
    %cst_39 = arith.constant 9.99999974E-6 : f32
    %74 = vector.broadcast %cst_39 : f32 to vector<8x1xf32>
    %75 = arith.addf %71, %74 : vector<8x1xf32>
    %76 = math.rsqrt %75 : vector<8x1xf32>
    %77 = vector.broadcast %76 : vector<8x1xf32> to vector<8x32xf32>
    %78 = arith.mulf %73, %77 : vector<8x32xf32>
    %79 = vector.broadcast %59 : vector<1x32xf32> to vector<8x32xf32>
    %80 = arith.mulf %78, %79 : vector<8x32xf32>
    %81 = vector.broadcast %60 : vector<1x32xf32> to vector<8x32xf32>
    %82 = arith.addf %80, %81 : vector<8x32xf32>
    %c0_40 = arith.constant 0 : index
    %c0_41 = arith.constant 0 : index
    %83 = vector.load %arg15[%c0_40, %c0_41] : memref<32x64xf32, #tpu.memory_space<vmem>>, vector<32x64xf32>
    %cst_42 = arith.constant dense<0.000000e+00> : vector<8x64xf32>
    %84 = tpu.matmul %82, %83, %cst_42 {dimension_numbers = #tpu.dot_dimension_numbers<[1], [0], [0], [1], [0, 0, 1, 1], [], []>} : vector<8x32xf32>, vector<32x64xf32>, vector<8x64xf32> -> vector<8x64xf32>
    %c0_43 = arith.constant 0 : index
    %c0_44 = arith.constant 0 : index
    %85 = vector.load %arg16[%c0_43, %c0_44] : memref<1x64xf32, #tpu.memory_space<vmem>>, vector<1x64xf32>
    %86 = vector.broadcast %85 : vector<1x64xf32> to vector<8x64xf32>
    %87 = arith.addf %84, %86 : vector<8x64xf32>
    %cst_45 = arith.constant 0.000000e+00 : f32
    %88 = vector.broadcast %cst_45 : f32 to vector<8x64xf32>
    %89 = arith.maximumf %87, %88 : vector<8x64xf32>
    %c0_46 = arith.constant 0 : index
    %c0_47 = arith.constant 0 : index
    %90 = vector.load %arg17[%c0_46, %c0_47] : memref<64x32xf32, #tpu.memory_space<vmem>>, vector<64x32xf32>
    %cst_48 = arith.constant dense<0.000000e+00> : vector<8x32xf32>
    %91 = tpu.matmul %89, %90, %cst_48 {dimension_numbers = #tpu.dot_dimension_numbers<[1], [0], [0], [1], [0, 0, 1, 1], [], []>} : vector<8x64xf32>, vector<64x32xf32>, vector<8x32xf32> -> vector<8x32xf32>
    %c0_49 = arith.constant 0 : index
    %c0_50 = arith.constant 0 : index
    %92 = vector.load %arg18[%c0_49, %c0_50] : memref<1x32xf32, #tpu.memory_space<vmem>>, vector<1x32xf32>
    %93 = vector.broadcast %92 : vector<1x32xf32> to vector<8x32xf32>
    %94 = arith.addf %91, %93 : vector<8x32xf32>
    %95 = arith.addf %94, %82 : vector<8x32xf32>
    %c0_51 = arith.constant 0 : index
    %c0_52 = arith.constant 0 : index
    %96 = vector.load %arg19[%c0_51, %c0_52] : memref<1x32xf32, #tpu.memory_space<vmem>>, vector<1x32xf32>
    %c0_53 = arith.constant 0 : index
    %c0_54 = arith.constant 0 : index
    %97 = vector.load %arg20[%c0_53, %c0_54] : memref<1x32xf32, #tpu.memory_space<vmem>>, vector<1x32xf32>
    %cst_55 = arith.constant dense<0.000000e+00> : vector<8xf32>
    %98 = vector.multi_reduction <add>, %95, %cst_55 [1] : vector<8x32xf32> to vector<8xf32>
    %99 = vector.shape_cast %98 : vector<8xf32> to vector<8x1xf32>
    %cst_56 = arith.constant 3.200000e+01 : f32
    %100 = vector.broadcast %cst_56 : f32 to vector<8x1xf32>
    %101 = arith.divf %99, %100 : vector<8x1xf32>
    %102 = vector.broadcast %101 : vector<8x1xf32> to vector<8x32xf32>
    %103 = arith.subf %95, %102 : vector<8x32xf32>
    %104 = arith.mulf %103, %103 : vector<8x32xf32>
    %cst_57 = arith.constant dense<0.000000e+00> : vector<8xf32>
    %105 = vector.multi_reduction <add>, %104, %cst_57 [1] : vector<8x32xf32> to vector<8xf32>
    %106 = vector.shape_cast %105 : vector<8xf32> to vector<8x1xf32>
    %cst_58 = arith.constant 3.200000e+01 : f32
    %107 = vector.broadcast %cst_58 : f32 to vector<8x1xf32>
    %108 = arith.divf %106, %107 : vector<8x1xf32>
    %109 = vector.broadcast %101 : vector<8x1xf32> to vector<8x32xf32>
    %110 = arith.subf %95, %109 : vector<8x32xf32>
    %cst_59 = arith.constant 9.99999974E-6 : f32
    %111 = vector.broadcast %cst_59 : f32 to vector<8x1xf32>
    %112 = arith.addf %108, %111 : vector<8x1xf32>
    %113 = math.rsqrt %112 : vector<8x1xf32>
    %114 = vector.broadcast %113 : vector<8x1xf32> to vector<8x32xf32>
    %115 = arith.mulf %110, %114 : vector<8x32xf32>
    %116 = vector.broadcast %96 : vector<1x32xf32> to vector<8x32xf32>
    %117 = arith.mulf %115, %116 : vector<8x32xf32>
    %118 = vector.broadcast %97 : vector<1x32xf32> to vector<8x32xf32>
    %119 = arith.addf %117, %118 : vector<8x32xf32>
    %c0_60 = arith.constant 0 : index
    %c0_61 = arith.constant 0 : index
    %120 = vector.load %arg21[%c0_60, %c0_61] : memref<32x32xf32, #tpu.memory_space<vmem>>, vector<32x32xf32>
    %cst_62 = arith.constant dense<0.000000e+00> : vector<8x32xf32>
    %121 = tpu.matmul %119, %120, %cst_62 {dimension_numbers = #tpu.dot_dimension_numbers<[1], [0], [0], [1], [0, 0, 1, 1], [], []>} : vector<8x32xf32>, vector<32x32xf32>, vector<8x32xf32> -> vector<8x32xf32>
    %c0_63 = arith.constant 0 : index
    %c0_64 = arith.constant 0 : index
    %122 = vector.load %arg22[%c0_63, %c0_64] : memref<1x32xf32, #tpu.memory_space<vmem>>, vector<1x32xf32>
    %123 = vector.broadcast %122 : vector<1x32xf32> to vector<8x32xf32>
    %124 = arith.addf %121, %123 : vector<8x32xf32>
    %cst_65 = arith.constant 0.000000e+00 : f32
    %125 = vector.broadcast %cst_65 : f32 to vector<8x32xf32>
    %126 = arith.maximumf %124, %125 : vector<8x32xf32>
    %c0_66 = arith.constant 0 : index
    %c0_67 = arith.constant 0 : index
    %127 = vector.load %arg23[%c0_66, %c0_67] : memref<32x1xf32, #tpu.memory_space<vmem>>, vector<32x1xf32>
    %cst_68 = arith.constant dense<0.000000e+00> : vector<8x1xf32>
    %128 = tpu.matmul %126, %127, %cst_68 {dimension_numbers = #tpu.dot_dimension_numbers<[1], [0], [0], [1], [0, 0, 1, 1], [], []>} : vector<8x32xf32>, vector<32x1xf32>, vector<8x1xf32> -> vector<8x1xf32>
    %c0_69 = arith.constant 0 : index
    %c0_70 = arith.constant 0 : index
    %129 = vector.load %arg24[%c0_69, %c0_70] : memref<1x1xf32, #tpu.memory_space<vmem>>, vector<1x1xf32>
    %130 = vector.broadcast %129 : vector<1x1xf32> to vector<8x1xf32>
    %131 = arith.addf %128, %130 : vector<8x1xf32>
    %c0_71 = arith.constant 0 : index
    %c0_72 = arith.constant 0 : index
    %132 = vector.load %arg3[%c0_71, %c0_72] : memref<8x8xf32, #tpu.memory_space<vmem>>, vector<8x8xf32>
    %133 = vector.broadcast %131 : vector<8x1xf32> to vector<8x8xf32>
    %134 = arith.mulf %133, %132 : vector<8x8xf32>
    %c0_73 = arith.constant 0 : index
    %c0_74 = arith.constant 0 : index
    %135 = vector.load %arg25[%c0_73, %c0_74] : memref<8x8xf32, #tpu.memory_space<vmem>>, vector<8x8xf32>
    tpu.vector_store %arg25[%c0_73, %c0_74], %134 {strides = array<i32>} : memref<8x8xf32, #tpu.memory_space<vmem>>, vector<8x8xf32>,
    return
  }
  func.func @transform_0(%arg0: i32) -> (i32, i32) {
    %c0_i32 = arith.constant 0 : i32
    %c0_i32_0 = arith.constant 0 : i32
    return %arg0, %c0_i32 : i32, i32
  }
  func.func @transform_1(%arg0: i32) -> (i32, i32, i32) {
    %c0_i32 = arith.constant 0 : i32
    %c0_i32_0 = arith.constant 0 : i32
    %c0_i32_1 = arith.constant 0 : i32
    return %arg0, %c0_i32, %c0_i32_0 : i32, i32, i32
  }
  func.func @transform_2(%arg0: i32) -> (i32, i32) {
    %c0_i32 = arith.constant 0 : i32
    %c0_i32_0 = arith.constant 0 : i32
    return %arg0, %c0_i32 : i32, i32
  }
  func.func @transform_3(%arg0: i32) -> (i32, i32) {
    %c0_i32 = arith.constant 0 : i32
    %c0_i32_0 = arith.constant 0 : i32
    %c0_i32_1 = arith.constant 0 : i32
    return %c0_i32, %c0_i32_0 : i32, i32
  }
  func.func @transform_4(%arg0: i32) -> (i32, i32) {
    %c0_i32 = arith.constant 0 : i32
    %c0_i32_0 = arith.constant 0 : i32
    %c0_i32_1 = arith.constant 0 : i32
    return %c0_i32, %c0_i32_0 : i32, i32
  }
  func.func @transform_5(%arg0: i32) -> (i32, i32) {
    %c0_i32 = arith.constant 0 : i32
    %c0_i32_0 = arith.constant 0 : i32
    %c0_i32_1 = arith.constant 0 : i32
    return %c0_i32, %c0_i32_0 : i32, i32
  }
  func.func @transform_6(%arg0: i32) -> (i32, i32) {
    %c0_i32 = arith.constant 0 : i32
    %c0_i32_0 = arith.constant 0 : i32
    %c0_i32_1 = arith.constant 0 : i32
    return %c0_i32, %c0_i32_0 : i32, i32
  }
  func.func @transform_7(%arg0: i32) -> (i32, i32) {
    %c0_i32 = arith.constant 0 : i32
    %c0_i32_0 = arith.constant 0 : i32
    %c0_i32_1 = arith.constant 0 : i32
    return %c0_i32, %c0_i32_0 : i32, i32
  }
  func.func @transform_8(%arg0: i32) -> (i32, i32) {
    %c0_i32 = arith.constant 0 : i32
    %c0_i32_0 = arith.constant 0 : i32
    %c0_i32_1 = arith.constant 0 : i32
    return %c0_i32, %c0_i32_0 : i32, i32
  }
  func.func @transform_9(%arg0: i32) -> (i32, i32) {
    %c0_i32 = arith.constant 0 : i32
    %c0_i32_0 = arith.constant 0 : i32
    %c0_i32_1 = arith.constant 0 : i32
    return %c0_i32, %c0_i32_0 : i32, i32
  }
  func.func @transform_10(%arg0: i32) -> (i32, i32) {
    %c0_i32 = arith.constant 0 : i32
    %c0_i32_0 = arith.constant 0 : i32
    %c0_i32_1 = arith.constant 0 : i32
    return %c0_i32, %c0_i32_0 : i32, i32
  }
  func.func @transform_11(%arg0: i32) -> (i32, i32) {
    %c0_i32 = arith.constant 0 : i32
    %c0_i32_0 = arith.constant 0 : i32
    %c0_i32_1 = arith.constant 0 : i32
    return %c0_i32, %c0_i32_0 : i32, i32
  }
  func.func @transform_12(%arg0: i32) -> (i32, i32) {
    %c0_i32 = arith.constant 0 : i32
    %c0_i32_0 = arith.constant 0 : i32
    %c0_i32_1 = arith.constant 0 : i32
    return %c0_i32, %c0_i32_0 : i32, i32
  }
  func.func @transform_13(%arg0: i32) -> (i32, i32) {
    %c0_i32 = arith.constant 0 : i32
    %c0_i32_0 = arith.constant 0 : i32
    %c0_i32_1 = arith.constant 0 : i32
    return %c0_i32, %c0_i32_0 : i32, i32
  }
  func.func @transform_14(%arg0: i32) -> (i32, i32) {
    %c0_i32 = arith.constant 0 : i32
    %c0_i32_0 = arith.constant 0 : i32
    %c0_i32_1 = arith.constant 0 : i32
    return %c0_i32, %c0_i32_0 : i32, i32
  }
  func.func @transform_15(%arg0: i32) -> (i32, i32) {
    %c0_i32 = arith.constant 0 : i32
    %c0_i32_0 = arith.constant 0 : i32
    %c0_i32_1 = arith.constant 0 : i32
    return %c0_i32, %c0_i32_0 : i32, i32
  }
  func.func @transform_16(%arg0: i32) -> (i32, i32) {
    %c0_i32 = arith.constant 0 : i32
    %c0_i32_0 = arith.constant 0 : i32
    %c0_i32_1 = arith.constant 0 : i32
    return %c0_i32, %c0_i32_0 : i32, i32
  }
  func.func @transform_17(%arg0: i32) -> (i32, i32) {
    %c0_i32 = arith.constant 0 : i32
    %c0_i32_0 = arith.constant 0 : i32
    %c0_i32_1 = arith.constant 0 : i32
    return %c0_i32, %c0_i32_0 : i32, i32
  }
  func.func @transform_18(%arg0: i32) -> (i32, i32) {
    %c0_i32 = arith.constant 0 : i32
    %c0_i32_0 = arith.constant 0 : i32
    %c0_i32_1 = arith.constant 0 : i32
    return %c0_i32, %c0_i32_0 : i32, i32
  }
  func.func @transform_19(%arg0: i32) -> (i32, i32) {
    %c0_i32 = arith.constant 0 : i32
    %c0_i32_0 = arith.constant 0 : i32
    %c0_i32_1 = arith.constant 0 : i32
    return %c0_i32, %c0_i32_0 : i32, i32
  }
  func.func @transform_20(%arg0: i32) -> (i32, i32) {
    %c0_i32 = arith.constant 0 : i32
    %c0_i32_0 = arith.constant 0 : i32
    %c0_i32_1 = arith.constant 0 : i32
    return %c0_i32, %c0_i32_0 : i32, i32
  }
  func.func @transform_21(%arg0: i32) -> (i32, i32) {
    %c0_i32 = arith.constant 0 : i32
    %c0_i32_0 = arith.constant 0 : i32
    %c0_i32_1 = arith.constant 0 : i32
    return %c0_i32, %c0_i32_0 : i32, i32
  }
  func.func @transform_22(%arg0: i32) -> (i32, i32) {
    %c0_i32 = arith.constant 0 : i32
    %c0_i32_0 = arith.constant 0 : i32
    %c0_i32_1 = arith.constant 0 : i32
    return %c0_i32, %c0_i32_0 : i32, i32
  }
  func.func @transform_23(%arg0: i32) -> (i32, i32) {
    %c0_i32 = arith.constant 0 : i32
    %c0_i32_0 = arith.constant 0 : i32
    %c0_i32_1 = arith.constant 0 : i32
    return %c0_i32, %c0_i32_0 : i32, i32
  }
  func.func @transform_24(%arg0: i32) -> (i32, i32) {
    %c0_i32 = arith.constant 0 : i32
    %c0_i32_0 = arith.constant 0 : i32
    return %arg0, %c0_i32 : i32, i32
  }
}

</mosaic_0001>

<llo_original>
// kernel: tpu_custom_call.1
$region0: #{tpu_custom_call.1}
  #allocation0 [shape = 'u32[]', space=smem, size = 0x4, offset = 0x4, fixed_abs, tag = 'smem constant byte address 0x4 - core index']
  #allocation1 [shape = 'u32[72,128]{1,0:T(1,128)}', space=vmem, size = 0x9000, scoped, tag = 'internal scratch']
  #allocation2 [shape = 'f32[1,1]{1,0:T(1,128)S(1)}', space=vmem, size = 0x200, scoped, tag = 'scoped memory for tpu_custom_call.1']
  #allocation3 [shape = 'f32[1,1]{1,0:T(1,128)S(1)}', space=vmem, size = 0x200, scoped, tag = 'scoped memory for tpu_custom_call.1']
  %s0 = inlined_call_operand.vmem [shape: f32[64,16], index: 0, kind: input, shape index: {}]
  %s1 = inlined_call_operand.vmem [shape: f32[8,1,8], index: 1, kind: input, shape index: {}]
  %s2 = inlined_call_operand.vmem [shape: f32[8,8], index: 2, kind: input, shape index: {}]
  %s3 = inlined_call_operand.vmem [shape: f32[1,32], index: 3, kind: input, shape index: {}]
  %s4 = inlined_call_operand.vmem [shape: f32[1,32], index: 4, kind: input, shape index: {}]
  %s5 = inlined_call_operand.vmem [shape: f32[1,32], index: 5, kind: input, shape index: {}]
  %s6 = inlined_call_operand.<no memory space> [shape: f32[1,1], index: 6, kind: input, shape index: {}]
  %s7 = inlined_call_operand.vmem [shape: f32[16,32], index: 7, kind: input, shape index: {}]
  %s8 = inlined_call_operand.vmem [shape: f32[1,32], index: 8, kind: input, shape index: {}]
  %s9 = inlined_call_operand.vmem [shape: f32[32,64], index: 9, kind: input, shape index: {}]
  %s10 = inlined_call_operand.vmem [shape: f32[32,32], index: 10, kind: input, shape index: {}]
  %s11 = inlined_call_operand.vmem [shape: f32[1,32], index: 11, kind: input, shape index: {}]
  %s12 = inlined_call_operand.vmem [shape: f32[1,32], index: 12, kind: input, shape index: {}]
  %s13 = inlined_call_operand.vmem [shape: f32[1,32], index: 13, kind: input, shape index: {}]
  %s14 = inlined_call_operand.vmem [shape: f32[32,64], index: 14, kind: input, shape index: {}]
  %s15 = inlined_call_operand.vmem [shape: f32[1,64], index: 15, kind: input, shape index: {}]
  %s16 = inlined_call_operand.vmem [shape: f32[64,32], index: 16, kind: input, shape index: {}]
  %s17 = inlined_call_operand.vmem [shape: f32[1,32], index: 17, kind: input, shape index: {}]
  %s18 = inlined_call_operand.vmem [shape: f32[1,32], index: 18, kind: input, shape index: {}]
  %s19 = inlined_call_operand.vmem [shape: f32[1,32], index: 19, kind: input, shape index: {}]
  %s20 = inlined_call_operand.vmem [shape: f32[32,32], index: 20, kind: input, shape index: {}]
  %s21 = inlined_call_operand.vmem [shape: f32[1,32], index: 21, kind: input, shape index: {}]
  %s22 = inlined_call_operand.vmem [shape: f32[32,1], index: 22, kind: input, shape index: {}]
  %s23 = inlined_call_operand.<no memory space> [shape: f32[1,1], index: 23, kind: input, shape index: {}]
  %s24 = inlined_call_operand.hbm [shape: f32[8,8], index: 24, kind: output, shape index: {}]
  %s25 = sld [smem:[#allocation0]]
  $region106: #{tpu_custom_call.1} parent=0
    _
  %s27 = ssub.s32 1, %s25
  %s28 = scalar_select 0, %s27, %s25
  %v29 = vstv %s6
  %30 = vst [vmem:[#allocation2] sm:$0x1] %v29
  %v31 = vstv %s23
  %32 = vst [vmem:[#allocation3] sm:$0x1] %v31
  $region1: #{tpu_custom_call.1} parent=0
    #allocation4 [shape = 'u8[4096]{0}', space=vmem, size = 0x1000, scoped, tag = 'output window, operand 0, single buffered']
    #allocation5 [shape = 's32[1]{0}', space=sflag, size = 0x4, scoped, tag = 'scoped memory for tpu_custom_call.1']
    %33 = vsyncpa [#allocation5], 0
    // Predicated region
    $region2: #{tpu_custom_call.1} parent=1 // pred_check
      _
    $region3: #{tpu_custom_call.1} parent=1 // pred_check_branch
      %35 = sbr.rel (0) target = $region5
    $region4: #{tpu_custom_call.1} parent=1 // pred_region
      _
    $region5: #{tpu_custom_call.1} parent=1 // pred_fallthru
      _
    // Predicated region
    $region6: #{tpu_custom_call.1} parent=1 // pred_check
      _
    $region7: #{tpu_custom_call.1} parent=1 // pred_check_branch
      %37 = sbr.rel (0) target = $region9
    $region8: #{tpu_custom_call.1} parent=1 // pred_region
      _
    $region9: #{tpu_custom_call.1} parent=1 // pred_fallthru
      _
    // Predicated region
    $region10: #{tpu_custom_call.1} parent=1 // pred_check
      _
    $region11: #{tpu_custom_call.1} parent=1 // pred_check_branch
      %39 = sbr.rel (0) target = $region13
    $region12: #{tpu_custom_call.1} parent=1 // pred_region
      _
    $region13: #{tpu_custom_call.1} parent=1 // pred_fallthru
      _
    // Predicated region
    $region14: #{tpu_custom_call.1} parent=1 // pred_check
      _
    $region15: #{tpu_custom_call.1} parent=1 // pred_check_branch
      %41 = sbr.rel (0) target = $region17
    $region16: #{tpu_custom_call.1} parent=1 // pred_region
      _
    $region17: #{tpu_custom_call.1} parent=1 // pred_fallthru
      _
    // Predicated region
    $region18: #{tpu_custom_call.1} parent=1 // pred_check
      _
    $region19: #{tpu_custom_call.1} parent=1 // pred_check_branch
      %43 = sbr.rel (0) target = $region21
    $region20: #{tpu_custom_call.1} parent=1 // pred_region
      _
    $region21: #{tpu_custom_call.1} parent=1 // pred_fallthru
      _
    // Predicated region
    $region22: #{tpu_custom_call.1} parent=1 // pred_check
      _
    $region23: #{tpu_custom_call.1} parent=1 // pred_check_branch
      %45 = sbr.rel (0) target = $region25
    $region24: #{tpu_custom_call.1} parent=1 // pred_region
      _
    $region25: #{tpu_custom_call.1} parent=1 // pred_fallthru
      _
    // Predicated region
    $region26: #{tpu_custom_call.1} parent=1 // pred_check
      _
    $region27: #{tpu_custom_call.1} parent=1 // pred_check_branch
      %47 = sbr.rel (0) target = $region29
    $region28: #{tpu_custom_call.1} parent=1 // pred_region
      _
    $region29: #{tpu_custom_call.1} parent=1 // pred_fallthru
      _
    // Predicated region
    $region30: #{tpu_custom_call.1} parent=1 // pred_check
      _
    $region31: #{tpu_custom_call.1} parent=1 // pred_check_branch
      %49 = sbr.rel (0) target = $region33
    $region32: #{tpu_custom_call.1} parent=1 // pred_region
      _
    $region33: #{tpu_custom_call.1} parent=1 // pred_fallthru
      _
    // Predicated region
    $region34: #{tpu_custom_call.1} parent=1 // pred_check
      _
    $region35: #{tpu_custom_call.1} parent=1 // pred_check_branch
      %51 = sbr.rel (0) target = $region37
    $region36: #{tpu_custom_call.1} parent=1 // pred_region
      _
    $region37: #{tpu_custom_call.1} parent=1 // pred_fallthru
      _
    // Predicated region
    $region38: #{tpu_custom_call.1} parent=1 // pred_check
      _
    $region39: #{tpu_custom_call.1} parent=1 // pred_check_branch
      %53 = sbr.rel (0) target = $region41
    $region40: #{tpu_custom_call.1} parent=1 // pred_region
      _
    $region41: #{tpu_custom_call.1} parent=1 // pred_fallthru
      _
    // Predicated region
    $region42: #{tpu_custom_call.1} parent=1 // pred_check
      _
    $region43: #{tpu_custom_call.1} parent=1 // pred_check_branch
      %55 = sbr.rel (0) target = $region45
    $region44: #{tpu_custom_call.1} parent=1 // pred_region
      _
    $region45: #{tpu_custom_call.1} parent=1 // pred_fallthru
      _
    // Predicated region
    $region46: #{tpu_custom_call.1} parent=1 // pred_check
      _
    $region47: #{tpu_custom_call.1} parent=1 // pred_check_branch
      %57 = sbr.rel (0) target = $region49
    $region48: #{tpu_custom_call.1} parent=1 // pred_region
      _
    $region49: #{tpu_custom_call.1} parent=1 // pred_fallthru
      _
    // Predicated region
    $region50: #{tpu_custom_call.1} parent=1 // pred_check
      _
    $region51: #{tpu_custom_call.1} parent=1 // pred_check_branch
      %59 = sbr.rel (0) target = $region53
    $region52: #{tpu_custom_call.1} parent=1 // pred_region
      _
    $region53: #{tpu_custom_call.1} parent=1 // pred_fallthru
      _
    // Predicated region
    $region54: #{tpu_custom_call.1} parent=1 // pred_check
      _
    $region55: #{tpu_custom_call.1} parent=1 // pred_check_branch
      %61 = sbr.rel (0) target = $region57
    $region56: #{tpu_custom_call.1} parent=1 // pred_region
      _
    $region57: #{tpu_custom_call.1} parent=1 // pred_fallthru
      _
    // Predicated region
    $region58: #{tpu_custom_call.1} parent=1 // pred_check
      _
    $region59: #{tpu_custom_call.1} parent=1 // pred_check_branch
      %63 = sbr.rel (0) target = $region61
    $region60: #{tpu_custom_call.1} parent=1 // pred_region
      _
    $region61: #{tpu_custom_call.1} parent=1 // pred_fallthru
      _
    // Predicated region
    $region62: #{tpu_custom_call.1} parent=1 // pred_check
      _
    $region63: #{tpu_custom_call.1} parent=1 // pred_check_branch
      %65 = sbr.rel (0) target = $region65
    $region64: #{tpu_custom_call.1} parent=1 // pred_region
      _
    $region65: #{tpu_custom_call.1} parent=1 // pred_fallthru
      _
    // Predicated region
    $region66: #{tpu_custom_call.1} parent=1 // pred_check
      _
    $region67: #{tpu_custom_call.1} parent=1 // pred_check_branch
      %67 = sbr.rel (0) target = $region69
    $region68: #{tpu_custom_call.1} parent=1 // pred_region
      _
    $region69: #{tpu_custom_call.1} parent=1 // pred_fallthru
      _
    // Predicated region
    $region70: #{tpu_custom_call.1} parent=1 // pred_check
      _
    $region71: #{tpu_custom_call.1} parent=1 // pred_check_branch
      %69 = sbr.rel (0) target = $region73
    $region72: #{tpu_custom_call.1} parent=1 // pred_region
      _
    $region73: #{tpu_custom_call.1} parent=1 // pred_fallthru
      _
    // Predicated region
    $region74: #{tpu_custom_call.1} parent=1 // pred_check
      _
    $region75: #{tpu_custom_call.1} parent=1 // pred_check_branch
      %71 = sbr.rel (0) target = $region77
    $region76: #{tpu_custom_call.1} parent=1 // pred_region
      _
    $region77: #{tpu_custom_call.1} parent=1 // pred_fallthru
      _
    // Predicated region
    $region78: #{tpu_custom_call.1} parent=1 // pred_check
      _
    $region79: #{tpu_custom_call.1} parent=1 // pred_check_branch
      %73 = sbr.rel (0) target = $region81
    $region80: #{tpu_custom_call.1} parent=1 // pred_region
      _
    $region81: #{tpu_custom_call.1} parent=1 // pred_fallthru
      _
    // Predicated region
    $region82: #{tpu_custom_call.1} parent=1 // pred_check
      _
    $region83: #{tpu_custom_call.1} parent=1 // pred_check_branch
      %75 = sbr.rel (0) target = $region85
    $region84: #{tpu_custom_call.1} parent=1 // pred_region
      _
    $region85: #{tpu_custom_call.1} parent=1 // pred_fallthru
      _
    // Predicated region
    $region86: #{tpu_custom_call.1} parent=1 // pred_check
      _
    $region87: #{tpu_custom_call.1} parent=1 // pred_check_branch
      %77 = sbr.rel (0) target = $region89
    $region88: #{tpu_custom_call.1} parent=1 // pred_region
      _
    $region89: #{tpu_custom_call.1} parent=1 // pred_fallthru
      _
    // Predicated region
    $region90: #{tpu_custom_call.1} parent=1 // pred_check
      _
    $region91: #{tpu_custom_call.1} parent=1 // pred_check_branch
      %79 = sbr.rel (0) target = $region93
    $region92: #{tpu_custom_call.1} parent=1 // pred_region
      _
    $region93: #{tpu_custom_call.1} parent=1 // pred_fallthru
      _
    // Predicated region
    $region94: #{tpu_custom_call.1} parent=1 // pred_check
      _
    $region95: #{tpu_custom_call.1} parent=1 // pred_check_branch
      %81 = sbr.rel (0) target = $region97
    $region96: #{tpu_custom_call.1} parent=1 // pred_region
      _
    $region97: #{tpu_custom_call.1} parent=1 // pred_fallthru
      _
    %v82 = vld [vmem:[%s0] sm:$0xff]
    %v83 = vld [vmem:[%s0 + $0x8] sm:$0xff]
    %v84 = vld [vmem:[%s0 + $0x10] sm:$0xff]
    %v85 = vld [vmem:[%s0 + $0x18] sm:$0xff]
    %v86 = vld [vmem:[%s0 + $0x20] sm:$0xff]
    %v87 = vld [vmem:[%s0 + $0x28] sm:$0xff]
    %v88 = vld [vmem:[%s0 + $0x30] sm:$0xff]
    %v89 = vld [vmem:[%s0 + $0x38] sm:$0xff]
    %v90 = vld [vmem:[%s7] sm:$0xff]
    %v91 = vld [vmem:[%s7 + $0x8] sm:$0xff]
    %v92 = vld [vmem:[%s8] sm:$0x1]
    %v94 = vperm.slane %v92, 0
    %vm96 = vcmask 130048
    %v98 = vsel %vm96, %v82, 0
    %v101 = vsel %vm96, %v83, 0
    %v104 = vsel %vm96, %v84, 0
    %v107 = vsel %vm96, %v85, 0
    %v110 = vsel %vm96, %v86, 0
    %v113 = vsel %vm96, %v87, 0
    %v116 = vsel %vm96, %v88, 0
    %v119 = vsel %vm96, %v89, 0
    %121 = vmatpush.msra.mxu0 0.0
    %122 = vmatpush.msra.mxu0 0.0
    %123 = vmatpush.msra.mxu0 0.0
    %124 = vmatpush.msra.mxu0 0.0
    %125 = vmatpush.msra.mxu0 0.0
    %126 = vmatpush.msra.mxu0 0.0
    %127 = vmatpush.msra.mxu0 0.0
    %128 = vmatpush.msra.mxu0 0.0
    %129 = vmatpush.msra.mxu0 0.0
    %130 = vmatpush.msra.mxu0 0.0
    %131 = vmatpush.msra.mxu0 0.0
    %132 = vmatpush.msra.mxu0 0.0
    %133 = vmatpush.msra.mxu0 0.0
    %134 = vmatpush.msra.mxu0 0.0
    %135 = vmatpush.msra.mxu0 %v91
    %136 = vmatpush.msra.mxu0 %v90
    %137 = vmatmul.f32.gmra.mxu0 %v98
    %v138 = vpop.f32.mrf.mxu0
    %v139 = vadd.f32 %v94, %v138
    %140 = vmatmul.f32.gmra.mxu0 %v101
    %v141 = vpop.f32.mrf.mxu0
    %v142 = vadd.f32 %v94, %v141
    %143 = vmatmul.f32.gmra.mxu0 %v104
    %v144 = vpop.f32.mrf.mxu0
    %v145 = vadd.f32 %v94, %v144
    %146 = vmatmul.f32.gmra.mxu0 %v107
    %v147 = vpop.f32.mrf.mxu0
    %v148 = vadd.f32 %v94, %v147
    %149 = vmatmul.f32.gmra.mxu0 %v110
    %v150 = vpop.f32.mrf.mxu0
    %v151 = vadd.f32 %v94, %v150
    %152 = vmatmul.f32.gmra.mxu0 %v113
    %v153 = vpop.f32.mrf.mxu0
    %v154 = vadd.f32 %v94, %v153
    %155 = vmatmul.f32.gmra.mxu0 %v116
    %v156 = vpop.f32.mrf.mxu0
    %v157 = vadd.f32 %v94, %v156
    %158 = vmatmul.f32.gmra.mxu0 %v119
    %v159 = vpop.f32.mrf.mxu0
    %v160 = vadd.f32 %v94, %v159
    %161 = vdwg.mxu0
    %v162 = vmax.f32 %v139, 0.0
    %v163 = vmax.f32 %v142, 0.0
    %v164 = vmax.f32 %v145, 0.0
    %v165 = vmax.f32 %v148, 0.0
    %v166 = vmax.f32 %v151, 0.0
    %v167 = vmax.f32 %v154, 0.0
    %v168 = vmax.f32 %v157, 0.0
    %v169 = vmax.f32 %v160, 0.0
    %v170 = vld [vmem:[%s9] sm:$0xff]
    %v171 = vld [vmem:[%s9 + $0x8] sm:$0xff]
    %v172 = vld [vmem:[%s9 + $0x10] sm:$0xff]
    %v173 = vld [vmem:[%s9 + $0x18] sm:$0xff]
    %vm174 = vcmask 261120
    %v176 = vsel %vm174, %v162, 0
    %v179 = vsel %vm174, %v163, 0
    %v182 = vsel %vm174, %v164, 0
    %v185 = vsel %vm174, %v165, 0
    %v188 = vsel %vm174, %v166, 0
    %v191 = vsel %vm174, %v167, 0
    %v194 = vsel %vm174, %v168, 0
    %v197 = vsel %vm174, %v169, 0
    %199 = vmatpush.msra.mxu0 0.0
    %200 = vmatpush.msra.mxu0 0.0
    %201 = vmatpush.msra.mxu0 0.0
    %202 = vmatpush.msra.mxu0 0.0
    %203 = vmatpush.msra.mxu0 0.0
    %204 = vmatpush.msra.mxu0 0.0
    %205 = vmatpush.msra.mxu0 0.0
    %206 = vmatpush.msra.mxu0 0.0
    %207 = vmatpush.msra.mxu0 0.0
    %208 = vmatpush.msra.mxu0 0.0
    %209 = vmatpush.msra.mxu0 0.0
    %210 = vmatpush.msra.mxu0 0.0
    %211 = vmatpush.msra.mxu0 %v173
    %212 = vmatpush.msra.mxu0 %v172
    %213 = vmatpush.msra.mxu0 %v171
    %214 = vmatpush.msra.mxu0 %v170
    %215 = vmatmul.f32.gmra.mxu0 %v176
    %v216 = vpop.f32.mrf.mxu0
    %v217 = vadd.f32 0.0, %v216
    %218 = vmatmul.f32.gmra.mxu0 %v179
    %v219 = vpop.f32.mrf.mxu0
    %v220 = vadd.f32 0.0, %v219
    %221 = vmatmul.f32.gmra.mxu0 %v182
    %v222 = vpop.f32.mrf.mxu0
    %v223 = vadd.f32 0.0, %v222
    %224 = vmatmul.f32.gmra.mxu0 %v185
    %v225 = vpop.f32.mrf.mxu0
    %v226 = vadd.f32 0.0, %v225
    %227 = vmatmul.f32.gmra.mxu0 %v188
    %v228 = vpop.f32.mrf.mxu0
    %v229 = vadd.f32 0.0, %v228
    %230 = vmatmul.f32.gmra.mxu0 %v191
    %v231 = vpop.f32.mrf.mxu0
    %v232 = vadd.f32 0.0, %v231
    %233 = vmatmul.f32.gmra.mxu0 %v194
    %v234 = vpop.f32.mrf.mxu0
    %v235 = vadd.f32 0.0, %v234
    %236 = vmatmul.f32.gmra.mxu0 %v197
    %v237 = vpop.f32.mrf.mxu0
    %v238 = vadd.f32 0.0, %v237
    %239 = vdwg.mxu0
    %v240 = vld [vmem:[%s4] sm:$0x1]
    %v242 = vsel %vm174, %v240, 0
    %v245 = vsel %vm174, %v217, 0
    %247 = vmatpush.xpose.msra.mxu0 0.0
    %248 = vmatpush.xpose.msra.mxu0 0.0
    %249 = vmatpush.xpose.msra.mxu0 0.0
    %250 = vmatpush.xpose.msra.mxu0 0.0
    %251 = vmatpush.xpose.msra.mxu0 0.0
    %252 = vmatpush.xpose.msra.mxu0 0.0
    %253 = vmatpush.xpose.msra.mxu0 0.0
    %254 = vmatpush.xpose.msra.mxu0 0.0
    %255 = vmatpush.xpose.msra.mxu0 0.0
    %256 = vmatpush.xpose.msra.mxu0 0.0
    %257 = vmatpush.xpose.msra.mxu0 0.0
    %258 = vmatpush.xpose.msra.mxu0 0.0
    %259 = vmatpush.xpose.msra.mxu0 0.0
    %260 = vmatpush.xpose.msra.mxu0 0.0
    %261 = vmatpush.xpose.msra.mxu0 0.0
    %262 = vmatpush.xpose.msra.mxu0 %v245
    %263 = vmatmul.f32.gmra.mxu0 %v242
    %v264 = vpop.f32.mrf.mxu0
    %v265 = vadd.f32 0.0, %v264
    %266 = vdwg.mxu0
    %v268 = vsel %vm174, %v220, 0
    %270 = vmatpush.xpose.msra.mxu0 0.0
    %271 = vmatpush.xpose.msra.mxu0 0.0
    %272 = vmatpush.xpose.msra.mxu0 0.0
    %273 = vmatpush.xpose.msra.mxu0 0.0
    %274 = vmatpush.xpose.msra.mxu0 0.0
    %275 = vmatpush.xpose.msra.mxu0 0.0
    %276 = vmatpush.xpose.msra.mxu0 0.0
    %277 = vmatpush.xpose.msra.mxu0 0.0
    %278 = vmatpush.xpose.msra.mxu0 0.0
    %279 = vmatpush.xpose.msra.mxu0 0.0
    %280 = vmatpush.xpose.msra.mxu0 0.0
    %281 = vmatpush.xpose.msra.mxu0 0.0
    %282 = vmatpush.xpose.msra.mxu0 0.0
    %283 = vmatpush.xpose.msra.mxu0 0.0
    %284 = vmatpush.xpose.msra.mxu0 0.0
    %285 = vmatpush.xpose.msra.mxu0 %v268
    %286 = vmatmul.f32.gmra.mxu0 %v242
    %v287 = vpop.f32.mrf.mxu0
    %v288 = vadd.f32 0.0, %v287
    %289 = vdwg.mxu0
    %v291 = vsel %vm174, %v223, 0
    %293 = vmatpush.xpose.msra.mxu0 0.0
    %294 = vmatpush.xpose.msra.mxu0 0.0
    %295 = vmatpush.xpose.msra.mxu0 0.0
    %296 = vmatpush.xpose.msra.mxu0 0.0
    %297 = vmatpush.xpose.msra.mxu0 0.0
    %298 = vmatpush.xpose.msra.mxu0 0.0
    %299 = vmatpush.xpose.msra.mxu0 0.0
    %300 = vmatpush.xpose.msra.mxu0 0.0
    %301 = vmatpush.xpose.msra.mxu0 0.0
    %302 = vmatpush.xpose.msra.mxu0 0.0
    %303 = vmatpush.xpose.msra.mxu0 0.0
    %304 = vmatpush.xpose.msra.mxu0 0.0
    %305 = vmatpush.xpose.msra.mxu0 0.0
    %306 = vmatpush.xpose.msra.mxu0 0.0
    %307 = vmatpush.xpose.msra.mxu0 0.0
    %308 = vmatpush.xpose.msra.mxu0 %v291
    %309 = vmatmul.f32.gmra.mxu0 %v242
    %v310 = vpop.f32.mrf.mxu0
    %v311 = vadd.f32 0.0, %v310
    %312 = vdwg.mxu0
    %v314 = vsel %vm174, %v226, 0
    %316 = vmatpush.xpose.msra.mxu0 0.0
    %317 = vmatpush.xpose.msra.mxu0 0.0
    %318 = vmatpush.xpose.msra.mxu0 0.0
    %319 = vmatpush.xpose.msra.mxu0 0.0
    %320 = vmatpush.xpose.msra.mxu0 0.0
    %321 = vmatpush.xpose.msra.mxu0 0.0
    %322 = vmatpush.xpose.msra.mxu0 0.0
    %323 = vmatpush.xpose.msra.mxu0 0.0
    %324 = vmatpush.xpose.msra.mxu0 0.0
    %325 = vmatpush.xpose.msra.mxu0 0.0
    %326 = vmatpush.xpose.msra.mxu0 0.0
    %327 = vmatpush.xpose.msra.mxu0 0.0
    %328 = vmatpush.xpose.msra.mxu0 0.0
    %329 = vmatpush.xpose.msra.mxu0 0.0
    %330 = vmatpush.xpose.msra.mxu0 0.0
    %331 = vmatpush.xpose.msra.mxu0 %v314
    %332 = vmatmul.f32.gmra.mxu0 %v242
    %v333 = vpop.f32.mrf.mxu0
    %v334 = vadd.f32 0.0, %v333
    %335 = vdwg.mxu0
    %v337 = vsel %vm174, %v229, 0
    %339 = vmatpush.xpose.msra.mxu0 0.0
    %340 = vmatpush.xpose.msra.mxu0 0.0
    %341 = vmatpush.xpose.msra.mxu0 0.0
    %342 = vmatpush.xpose.msra.mxu0 0.0
    %343 = vmatpush.xpose.msra.mxu0 0.0
    %344 = vmatpush.xpose.msra.mxu0 0.0
    %345 = vmatpush.xpose.msra.mxu0 0.0
    %346 = vmatpush.xpose.msra.mxu0 0.0
    %347 = vmatpush.xpose.msra.mxu0 0.0
    %348 = vmatpush.xpose.msra.mxu0 0.0
    %349 = vmatpush.xpose.msra.mxu0 0.0
    %350 = vmatpush.xpose.msra.mxu0 0.0
    %351 = vmatpush.xpose.msra.mxu0 0.0
    %352 = vmatpush.xpose.msra.mxu0 0.0
    %353 = vmatpush.xpose.msra.mxu0 0.0
    %354 = vmatpush.xpose.msra.mxu0 %v337
    %355 = vmatmul.f32.gmra.mxu0 %v242
    %v356 = vpop.f32.mrf.mxu0
    %v357 = vadd.f32 0.0, %v356
    %358 = vdwg.mxu0
    %v360 = vsel %vm174, %v232, 0
    %362 = vmatpush.xpose.msra.mxu0 0.0
    %363 = vmatpush.xpose.msra.mxu0 0.0
    %364 = vmatpush.xpose.msra.mxu0 0.0
    %365 = vmatpush.xpose.msra.mxu0 0.0
    %366 = vmatpush.xpose.msra.mxu0 0.0
    %367 = vmatpush.xpose.msra.mxu0 0.0
    %368 = vmatpush.xpose.msra.mxu0 0.0
    %369 = vmatpush.xpose.msra.mxu0 0.0
    %370 = vmatpush.xpose.msra.mxu0 0.0
    %371 = vmatpush.xpose.msra.mxu0 0.0
    %372 = vmatpush.xpose.msra.mxu0 0.0
    %373 = vmatpush.xpose.msra.mxu0 0.0
    %374 = vmatpush.xpose.msra.mxu0 0.0
    %375 = vmatpush.xpose.msra.mxu0 0.0
    %376 = vmatpush.xpose.msra.mxu0 0.0
    %377 = vmatpush.xpose.msra.mxu0 %v360
    %378 = vmatmul.f32.gmra.mxu0 %v242
    %v379 = vpop.f32.mrf.mxu0
    %v380 = vadd.f32 0.0, %v379
    %381 = vdwg.mxu0
    %v383 = vsel %vm174, %v235, 0
    %385 = vmatpush.xpose.msra.mxu0 0.0
    %386 = vmatpush.xpose.msra.mxu0 0.0
    %387 = vmatpush.xpose.msra.mxu0 0.0
    %388 = vmatpush.xpose.msra.mxu0 0.0
    %389 = vmatpush.xpose.msra.mxu0 0.0
    %390 = vmatpush.xpose.msra.mxu0 0.0
    %391 = vmatpush.xpose.msra.mxu0 0.0
    %392 = vmatpush.xpose.msra.mxu0 0.0
    %393 = vmatpush.xpose.msra.mxu0 0.0
    %394 = vmatpush.xpose.msra.mxu0 0.0
    %395 = vmatpush.xpose.msra.mxu0 0.0
    %396 = vmatpush.xpose.msra.mxu0 0.0
    %397 = vmatpush.xpose.msra.mxu0 0.0
    %398 = vmatpush.xpose.msra.mxu0 0.0
    %399 = vmatpush.xpose.msra.mxu0 0.0
    %400 = vmatpush.xpose.msra.mxu0 %v383
    %401 = vmatmul.f32.gmra.mxu0 %v242
    %v402 = vpop.f32.mrf.mxu0
    %v403 = vadd.f32 0.0, %v402
    %404 = vdwg.mxu0
    %v406 = vsel %vm174, %v238, 0
    %408 = vmatpush.xpose.msra.mxu0 0.0
    %409 = vmatpush.xpose.msra.mxu0 0.0
    %410 = vmatpush.xpose.msra.mxu0 0.0
    %411 = vmatpush.xpose.msra.mxu0 0.0
    %412 = vmatpush.xpose.msra.mxu0 0.0
    %413 = vmatpush.xpose.msra.mxu0 0.0
    %414 = vmatpush.xpose.msra.mxu0 0.0
    %415 = vmatpush.xpose.msra.mxu0 0.0
    %416 = vmatpush.xpose.msra.mxu0 0.0
    %417 = vmatpush.xpose.msra.mxu0 0.0
    %418 = vmatpush.xpose.msra.mxu0 0.0
    %419 = vmatpush.xpose.msra.mxu0 0.0
    %420 = vmatpush.xpose.msra.mxu0 0.0
    %421 = vmatpush.xpose.msra.mxu0 0.0
    %422 = vmatpush.xpose.msra.mxu0 0.0
    %423 = vmatpush.xpose.msra.mxu0 %v406
    %424 = vmatmul.f32.gmra.mxu0 %v242
    %v425 = vpop.f32.mrf.mxu0
    %v426 = vadd.f32 0.0, %v425
    %427 = vdwg.mxu0
    %v428 = vld [vmem:[%s1] sm:$0x1]
    %v429 = vld [vmem:[%s1 + $0x1] sm:$0x1]
    %v430 = vld [vmem:[%s1 + $0x2] sm:$0x1]
    %v431 = vld [vmem:[%s1 + $0x3] sm:$0x1]
    %v432 = vld [vmem:[%s1 + $0x4] sm:$0x1]
    %v433 = vld [vmem:[%s1 + $0x5] sm:$0x1]
    %v434 = vld [vmem:[%s1 + $0x6] sm:$0x1]
    %v435 = vld [vmem:[%s1 + $0x7] sm:$0x1]
    %vm436 = vcmp.gt.f32.partialorder %v428, 0.0
    %vm437 = vcmp.gt.f32.partialorder %v429, 0.0
    %vm438 = vcmp.gt.f32.partialorder %v430, 0.0
    %vm439 = vcmp.gt.f32.partialorder %v431, 0.0
    %vm440 = vcmp.gt.f32.partialorder %v432, 0.0
    %vm441 = vcmp.gt.f32.partialorder %v433, 0.0
    %vm442 = vcmp.gt.f32.partialorder %v434, 0.0
    %vm443 = vcmp.gt.f32.partialorder %v435, 0.0
    %v444 = vsel %vm436, %v265, -1e+09
    %v445 = vsel %vm437, %v288, -1e+09
    %v446 = vsel %vm438, %v311, -1e+09
    %v447 = vsel %vm439, %v334, -1e+09
    %v448 = vsel %vm440, %v357, -1e+09
    %v449 = vsel %vm441, %v380, -1e+09
    %v450 = vsel %vm442, %v403, -1e+09
    %v451 = vsel %vm443, %v426, -1e+09
    %v452 = vld [vmem:[#allocation2] sm:$0x1]
    %vm453 = vcmask 57344
    %v454 = vsel %vm453, %v444, -inf
    %455 = vmax.xlane.f32.xlu0 %v454
    %v456 = vpop.xlane.xlu0 %455
    %v457 = vsel %vm453, %v445, -inf
    %458 = vmax.xlane.f32.xlu0 %v457
    %v459 = vpop.xlane.xlu0 %458
    %v460 = vsel %vm453, %v446, -inf
    %461 = vmax.xlane.f32.xlu0 %v460
    %v462 = vpop.xlane.xlu0 %461
    %v463 = vsel %vm453, %v447, -inf
    %464 = vmax.xlane.f32.xlu0 %v463
    %v465 = vpop.xlane.xlu0 %464
    %v466 = vsel %vm453, %v448, -inf
    %467 = vmax.xlane.f32.xlu0 %v466
    %v468 = vpop.xlane.xlu0 %467
    %v469 = vsel %vm453, %v449, -inf
    %470 = vmax.xlane.f32.xlu0 %v469
    %v471 = vpop.xlane.xlu0 %470
    %v472 = vsel %vm453, %v450, -inf
    %473 = vmax.xlane.f32.xlu0 %v472
    %v474 = vpop.xlane.xlu0 %473
    %v475 = vsel %vm453, %v451, -inf
    %476 = vmax.xlane.f32.xlu0 %v475
    %v477 = vpop.xlane.xlu0 %476
    %v478 = vmax.f32 %v456, %v452
    %v479 = vmax.f32 %v459, %v452
    %v480 = vmax.f32 %v462, %v452
    %v481 = vmax.f32 %v465, %v452
    %v482 = vmax.f32 %v468, %v452
    %v483 = vmax.f32 %v471, %v452
    %v484 = vmax.f32 %v474, %v452
    %v485 = vmax.f32 %v477, %v452
    %487 = vset.pattern.permute.xlu0 0
    %488 = vperm.xlu0 %487, %v478
    %v489 = vpop.permute.xlu0 %488
    %492 = vset.pattern.permute.xlu0 0
    %493 = vperm.xlu0 %492, %v479
    %v494 = vpop.permute.xlu0 %493
    %497 = vset.pattern.permute.xlu0 0
    %498 = vperm.xlu0 %497, %v480
    %v499 = vpop.permute.xlu0 %498
    %502 = vset.pattern.permute.xlu0 0
    %503 = vperm.xlu0 %502, %v481
    %v504 = vpop.permute.xlu0 %503
    %507 = vset.pattern.permute.xlu0 0
    %508 = vperm.xlu0 %507, %v482
    %v509 = vpop.permute.xlu0 %508
    %512 = vset.pattern.permute.xlu0 0
    %513 = vperm.xlu0 %512, %v483
    %v514 = vpop.permute.xlu0 %513
    %517 = vset.pattern.permute.xlu0 0
    %518 = vperm.xlu0 %517, %v484
    %v519 = vpop.permute.xlu0 %518
    %522 = vset.pattern.permute.xlu0 0
    %523 = vperm.xlu0 %522, %v485
    %v524 = vpop.permute.xlu0 %523
    %v526 = vsub.f32 %v444, %v489
    %v527 = vsub.f32 %v445, %v494
    %v528 = vsub.f32 %v446, %v499
    %v529 = vsub.f32 %v447, %v504
    %v530 = vsub.f32 %v448, %v509
    %v531 = vsub.f32 %v449, %v514
    %v532 = vsub.f32 %v450, %v519
    %v533 = vsub.f32 %v451, %v524
    %v534 = vmul.f32 %v526, 1.442695
    %v535 = vpow.pop %v534
    %v536 = vmul.f32 %v527, 1.442695
    %v537 = vpow.pop %v536
    %v538 = vmul.f32 %v528, 1.442695
    %v539 = vpow.pop %v538
    %v540 = vmul.f32 %v529, 1.442695
    %v541 = vpow.pop %v540
    %v542 = vmul.f32 %v530, 1.442695
    %v543 = vpow.pop %v542
    %v544 = vmul.f32 %v531, 1.442695
    %v545 = vpow.pop %v544
    %v546 = vmul.f32 %v532, 1.442695
    %v547 = vpow.pop %v546
    %v548 = vmul.f32 %v533, 1.442695
    %v549 = vpow.pop %v548
    %v550 = vsub.f32 %v452, %v478
    %v551 = vsub.f32 %v452, %v479
    %v552 = vsub.f32 %v452, %v480
    %v553 = vsub.f32 %v452, %v481
    %v554 = vsub.f32 %v452, %v482
    %v555 = vsub.f32 %v452, %v483
    %v556 = vsub.f32 %v452, %v484
    %v557 = vsub.f32 %v452, %v485
    %v558 = vmul.f32 %v550, 1.442695
    %v559 = vpow.pop %v558
    %v560 = vmul.f32 %v551, 1.442695
    %v561 = vpow.pop %v560
    %v562 = vmul.f32 %v552, 1.442695
    %v563 = vpow.pop %v562
    %v564 = vmul.f32 %v553, 1.442695
    %v565 = vpow.pop %v564
    %v566 = vmul.f32 %v554, 1.442695
    %v567 = vpow.pop %v566
    %v568 = vmul.f32 %v555, 1.442695
    %v569 = vpow.pop %v568
    %v570 = vmul.f32 %v556, 1.442695
    %v571 = vpow.pop %v570
    %v572 = vmul.f32 %v557, 1.442695
    %v573 = vpow.pop %v572
    %v574 = vsel %vm453, %v535, 0.0
    %575 = vadd.xlane.f32.xlu0 %v574
    %v576 = vpop.xlane.xlu0 %575
    %v577 = vsel %vm453, %v537, 0.0
    %578 = vadd.xlane.f32.xlu0 %v577
    %v579 = vpop.xlane.xlu0 %578
    %v580 = vsel %vm453, %v539, 0.0
    %581 = vadd.xlane.f32.xlu0 %v580
    %v582 = vpop.xlane.xlu0 %581
    %v583 = vsel %vm453, %v541, 0.0
    %584 = vadd.xlane.f32.xlu0 %v583
    %v585 = vpop.xlane.xlu0 %584
    %v586 = vsel %vm453, %v543, 0.0
    %587 = vadd.xlane.f32.xlu0 %v586
    %v588 = vpop.xlane.xlu0 %587
    %v589 = vsel %vm453, %v545, 0.0
    %590 = vadd.xlane.f32.xlu0 %v589
    %v591 = vpop.xlane.xlu0 %590
    %v592 = vsel %vm453, %v547, 0.0
    %593 = vadd.xlane.f32.xlu0 %v592
    %v594 = vpop.xlane.xlu0 %593
    %v595 = vsel %vm453, %v549, 0.0
    %596 = vadd.xlane.f32.xlu0 %v595
    %v597 = vpop.xlane.xlu0 %596
    %v598 = vadd.f32 %v559, %v576
    %v599 = vadd.f32 %v561, %v579
    %v600 = vadd.f32 %v563, %v582
    %v601 = vadd.f32 %v565, %v585
    %v602 = vadd.f32 %v567, %v588
    %v603 = vadd.f32 %v569, %v591
    %v604 = vadd.f32 %v571, %v594
    %v605 = vadd.f32 %v573, %v597
    %v606 = vrcp.pop %v598
    %v607 = vmul.f32 %v598, %v606
    %v608 = vsub.f32 1.0, %v607
    %v609 = vmul.f32 %v606, %v608
    %v610 = vadd.f32 %v606, %v609
    %vm611 = vweird.f32 %v598
    %vm612 = vweird.f32 %v606
    %vm613 = vmor %vm611, %vm612
    %v614 = vsel %vm613, %v606, %v610
    %v615 = vand.u32 2147483647, %v598
    %vm616 = vcmp.eq.f32.partialorder %v615, 8.507059e+37
    %v617 = vand.u32 %v598, 2147483648
    %v618 = vor.u32 1.1754944e-38, %v617
    %v619 = vsel %vm616, %v618, %v614
    %v620 = vrcp.pop %v599
    %v621 = vmul.f32 %v599, %v620
    %v622 = vsub.f32 1.0, %v621
    %v623 = vmul.f32 %v620, %v622
    %v624 = vadd.f32 %v620, %v623
    %vm625 = vweird.f32 %v599
    %vm626 = vweird.f32 %v620
    %vm627 = vmor %vm625, %vm626
    %v628 = vsel %vm627, %v620, %v624
    %v629 = vand.u32 2147483647, %v599
    %vm630 = vcmp.eq.f32.partialorder %v629, 8.507059e+37
    %v631 = vand.u32 %v599, 2147483648
    %v632 = vor.u32 1.1754944e-38, %v631
    %v633 = vsel %vm630, %v632, %v628
    %v634 = vrcp.pop %v600
    %v635 = vmul.f32 %v600, %v634
    %v636 = vsub.f32 1.0, %v635
    %v637 = vmul.f32 %v634, %v636
    %v638 = vadd.f32 %v634, %v637
    %vm639 = vweird.f32 %v600
    %vm640 = vweird.f32 %v634
    %vm641 = vmor %vm639, %vm640
    %v642 = vsel %vm641, %v634, %v638
    %v643 = vand.u32 2147483647, %v600
    %vm644 = vcmp.eq.f32.partialorder %v643, 8.507059e+37
    %v645 = vand.u32 %v600, 2147483648
    %v646 = vor.u32 1.1754944e-38, %v645
    %v647 = vsel %vm644, %v646, %v642
    %v648 = vrcp.pop %v601
    %v649 = vmul.f32 %v601, %v648
    %v650 = vsub.f32 1.0, %v649
    %v651 = vmul.f32 %v648, %v650
    %v652 = vadd.f32 %v648, %v651
    %vm653 = vweird.f32 %v601
    %vm654 = vweird.f32 %v648
    %vm655 = vmor %vm653, %vm654
    %v656 = vsel %vm655, %v648, %v652
    %v657 = vand.u32 2147483647, %v601
    %vm658 = vcmp.eq.f32.partialorder %v657, 8.507059e+37
    %v659 = vand.u32 %v601, 2147483648
    %v660 = vor.u32 1.1754944e-38, %v659
    %v661 = vsel %vm658, %v660, %v656
    %v662 = vrcp.pop %v602
    %v663 = vmul.f32 %v602, %v662
    %v664 = vsub.f32 1.0, %v663
    %v665 = vmul.f32 %v662, %v664
    %v666 = vadd.f32 %v662, %v665
    %vm667 = vweird.f32 %v602
    %vm668 = vweird.f32 %v662
    %vm669 = vmor %vm667, %vm668
    %v670 = vsel %vm669, %v662, %v666
    %v671 = vand.u32 2147483647, %v602
    %vm672 = vcmp.eq.f32.partialorder %v671, 8.507059e+37
    %v673 = vand.u32 %v602, 2147483648
    %v674 = vor.u32 1.1754944e-38, %v673
    %v675 = vsel %vm672, %v674, %v670
    %v676 = vrcp.pop %v603
    %v677 = vmul.f32 %v603, %v676
    %v678 = vsub.f32 1.0, %v677
    %v679 = vmul.f32 %v676, %v678
    %v680 = vadd.f32 %v676, %v679
    %vm681 = vweird.f32 %v603
    %vm682 = vweird.f32 %v676
    %vm683 = vmor %vm681, %vm682
    %v684 = vsel %vm683, %v676, %v680
    %v685 = vand.u32 2147483647, %v603
    %vm686 = vcmp.eq.f32.partialorder %v685, 8.507059e+37
    %v687 = vand.u32 %v603, 2147483648
    %v688 = vor.u32 1.1754944e-38, %v687
    %v689 = vsel %vm686, %v688, %v684
    %v690 = vrcp.pop %v604
    %v691 = vmul.f32 %v604, %v690
    %v692 = vsub.f32 1.0, %v691
    %v693 = vmul.f32 %v690, %v692
    %v694 = vadd.f32 %v690, %v693
    %vm695 = vweird.f32 %v604
    %vm696 = vweird.f32 %v690
    %vm697 = vmor %vm695, %vm696
    %v698 = vsel %vm697, %v690, %v694
    %v699 = vand.u32 2147483647, %v604
    %vm700 = vcmp.eq.f32.partialorder %v699, 8.507059e+37
    %v701 = vand.u32 %v604, 2147483648
    %v702 = vor.u32 1.1754944e-38, %v701
    %v703 = vsel %vm700, %v702, %v698
    %v704 = vrcp.pop %v605
    %v705 = vmul.f32 %v605, %v704
    %v706 = vsub.f32 1.0, %v705
    %v707 = vmul.f32 %v704, %v706
    %v708 = vadd.f32 %v704, %v707
    %vm709 = vweird.f32 %v605
    %vm710 = vweird.f32 %v704
    %vm711 = vmor %vm709, %vm710
    %v712 = vsel %vm711, %v704, %v708
    %v713 = vand.u32 2147483647, %v605
    %vm714 = vcmp.eq.f32.partialorder %v713, 8.507059e+37
    %v715 = vand.u32 %v605, 2147483648
    %v716 = vor.u32 1.1754944e-38, %v715
    %v717 = vsel %vm714, %v716, %v712
    %v718 = vld [vmem:[%s5] sm:$0x1]
    %720 = vset.pattern.permute.xlu0 0
    %721 = vperm.xlu0 %720, %v559
    %v722 = vpop.permute.xlu0 %721
    %v724 = vperm.slane %v722, 0
    %726 = vset.pattern.permute.xlu0 0
    %727 = vperm.xlu0 %726, %v561
    %v728 = vpop.permute.xlu0 %727
    %v730 = vperm.slane %v728, 0
    %732 = vset.pattern.permute.xlu0 0
    %733 = vperm.xlu0 %732, %v563
    %v734 = vpop.permute.xlu0 %733
    %v736 = vperm.slane %v734, 0
    %738 = vset.pattern.permute.xlu0 0
    %739 = vperm.xlu0 %738, %v565
    %v740 = vpop.permute.xlu0 %739
    %v742 = vperm.slane %v740, 0
    %744 = vset.pattern.permute.xlu0 0
    %745 = vperm.xlu0 %744, %v567
    %v746 = vpop.permute.xlu0 %745
    %v748 = vperm.slane %v746, 0
    %750 = vset.pattern.permute.xlu0 0
    %751 = vperm.xlu0 %750, %v569
    %v752 = vpop.permute.xlu0 %751
    %v754 = vperm.slane %v752, 0
    %756 = vset.pattern.permute.xlu0 0
    %757 = vperm.xlu0 %756, %v571
    %v758 = vpop.permute.xlu0 %757
    %v760 = vperm.slane %v758, 0
    %762 = vset.pattern.permute.xlu0 0
    %763 = vperm.xlu0 %762, %v573
    %v764 = vpop.permute.xlu0 %763
    %v766 = vperm.slane %v764, 0
    %v767 = vmul.f32 %v724, %v718
    %v768 = vmul.f32 %v730, %v718
    %v769 = vmul.f32 %v736, %v718
    %v770 = vmul.f32 %v742, %v718
    %v771 = vmul.f32 %v748, %v718
    %v772 = vmul.f32 %v754, %v718
    %v773 = vmul.f32 %v760, %v718
    %v774 = vmul.f32 %v766, %v718
    %775 = vrot.lane.b32.xlu0 %v217, 96
    %v776 = vpop.permute.xlu0 %775
    %vm778 = vcmask 64512
    %v780 = vsel %vm778, %v535, 0
    %782 = vmatpush.msra.mxu0 0.0
    %783 = vmatpush.msra.mxu0 0.0
    %784 = vmatpush.msra.mxu0 0.0
    %785 = vmatpush.msra.mxu0 0.0
    %786 = vmatpush.msra.mxu0 0.0
    %787 = vmatpush.msra.mxu0 0.0
    %788 = vmatpush.msra.mxu0 0.0
    %789 = vmatpush.msra.mxu0 0.0
    %790 = vmatpush.msra.mxu0 0.0
    %791 = vmatpush.msra.mxu0 0.0
    %792 = vmatpush.msra.mxu0 0.0
    %793 = vmatpush.msra.mxu0 0.0
    %794 = vmatpush.msra.mxu0 0.0
    %795 = vmatpush.msra.mxu0 0.0
    %796 = vmatpush.msra.mxu0 0.0
    %797 = vmatpush.msra.mxu0 %v776
    %798 = vmatmul.f32.gmra.mxu0 %v780
    %v799 = vpop.f32.mrf.mxu0
    %v800 = vadd.f32 0.0, %v799
    %801 = vdwg.mxu0
    %802 = vrot.lane.b32.xlu0 %v220, 96
    %v803 = vpop.permute.xlu0 %802
    %v806 = vsel %vm778, %v537, 0
    %808 = vmatpush.msra.mxu0 0.0
    %809 = vmatpush.msra.mxu0 0.0
    %810 = vmatpush.msra.mxu0 0.0
    %811 = vmatpush.msra.mxu0 0.0
    %812 = vmatpush.msra.mxu0 0.0
    %813 = vmatpush.msra.mxu0 0.0
    %814 = vmatpush.msra.mxu0 0.0
    %815 = vmatpush.msra.mxu0 0.0
    %816 = vmatpush.msra.mxu0 0.0
    %817 = vmatpush.msra.mxu0 0.0
    %818 = vmatpush.msra.mxu0 0.0
    %819 = vmatpush.msra.mxu0 0.0
    %820 = vmatpush.msra.mxu0 0.0
    %821 = vmatpush.msra.mxu0 0.0
    %822 = vmatpush.msra.mxu0 0.0
    %823 = vmatpush.msra.mxu0 %v803
    %824 = vmatmul.f32.gmra.mxu0 %v806
    %v825 = vpop.f32.mrf.mxu0
    %v826 = vadd.f32 0.0, %v825
    %827 = vdwg.mxu0
    %828 = vrot.lane.b32.xlu0 %v223, 96
    %v829 = vpop.permute.xlu0 %828
    %v832 = vsel %vm778, %v539, 0
    %834 = vmatpush.msra.mxu0 0.0
    %835 = vmatpush.msra.mxu0 0.0
    %836 = vmatpush.msra.mxu0 0.0
    %837 = vmatpush.msra.mxu0 0.0
    %838 = vmatpush.msra.mxu0 0.0
    %839 = vmatpush.msra.mxu0 0.0
    %840 = vmatpush.msra.mxu0 0.0
    %841 = vmatpush.msra.mxu0 0.0
    %842 = vmatpush.msra.mxu0 0.0
    %843 = vmatpush.msra.mxu0 0.0
    %844 = vmatpush.msra.mxu0 0.0
    %845 = vmatpush.msra.mxu0 0.0
    %846 = vmatpush.msra.mxu0 0.0
    %847 = vmatpush.msra.mxu0 0.0
    %848 = vmatpush.msra.mxu0 0.0
    %849 = vmatpush.msra.mxu0 %v829
    %850 = vmatmul.f32.gmra.mxu0 %v832
    %v851 = vpop.f32.mrf.mxu0
    %v852 = vadd.f32 0.0, %v851
    %853 = vdwg.mxu0
    %854 = vrot.lane.b32.xlu0 %v226, 96
    %v855 = vpop.permute.xlu0 %854
    %v858 = vsel %vm778, %v541, 0
    %860 = vmatpush.msra.mxu0 0.0
    %861 = vmatpush.msra.mxu0 0.0
    %862 = vmatpush.msra.mxu0 0.0
    %863 = vmatpush.msra.mxu0 0.0
    %864 = vmatpush.msra.mxu0 0.0
    %865 = vmatpush.msra.mxu0 0.0
    %866 = vmatpush.msra.mxu0 0.0
    %867 = vmatpush.msra.mxu0 0.0
    %868 = vmatpush.msra.mxu0 0.0
    %869 = vmatpush.msra.mxu0 0.0
    %870 = vmatpush.msra.mxu0 0.0
    %871 = vmatpush.msra.mxu0 0.0
    %872 = vmatpush.msra.mxu0 0.0
    %873 = vmatpush.msra.mxu0 0.0
    %874 = vmatpush.msra.mxu0 0.0
    %875 = vmatpush.msra.mxu0 %v855
    %876 = vmatmul.f32.gmra.mxu0 %v858
    %v877 = vpop.f32.mrf.mxu0
    %v878 = vadd.f32 0.0, %v877
    %879 = vdwg.mxu0
    %880 = vrot.lane.b32.xlu0 %v229, 96
    %v881 = vpop.permute.xlu0 %880
    %v884 = vsel %vm778, %v543, 0
    %886 = vmatpush.msra.mxu0 0.0
    %887 = vmatpush.msra.mxu0 0.0
    %888 = vmatpush.msra.mxu0 0.0
    %889 = vmatpush.msra.mxu0 0.0
    %890 = vmatpush.msra.mxu0 0.0
    %891 = vmatpush.msra.mxu0 0.0
    %892 = vmatpush.msra.mxu0 0.0
    %893 = vmatpush.msra.mxu0 0.0
    %894 = vmatpush.msra.mxu0 0.0
    %895 = vmatpush.msra.mxu0 0.0
    %896 = vmatpush.msra.mxu0 0.0
    %897 = vmatpush.msra.mxu0 0.0
    %898 = vmatpush.msra.mxu0 0.0
    %899 = vmatpush.msra.mxu0 0.0
    %900 = vmatpush.msra.mxu0 0.0
    %901 = vmatpush.msra.mxu0 %v881
    %902 = vmatmul.f32.gmra.mxu0 %v884
    %v903 = vpop.f32.mrf.mxu0
    %v904 = vadd.f32 0.0, %v903
    %905 = vdwg.mxu0
    %906 = vrot.lane.b32.xlu0 %v232, 96
    %v907 = vpop.permute.xlu0 %906
    %v910 = vsel %vm778, %v545, 0
    %912 = vmatpush.msra.mxu0 0.0
    %913 = vmatpush.msra.mxu0 0.0
    %914 = vmatpush.msra.mxu0 0.0
    %915 = vmatpush.msra.mxu0 0.0
    %916 = vmatpush.msra.mxu0 0.0
    %917 = vmatpush.msra.mxu0 0.0
    %918 = vmatpush.msra.mxu0 0.0
    %919 = vmatpush.msra.mxu0 0.0
    %920 = vmatpush.msra.mxu0 0.0
    %921 = vmatpush.msra.mxu0 0.0
    %922 = vmatpush.msra.mxu0 0.0
    %923 = vmatpush.msra.mxu0 0.0
    %924 = vmatpush.msra.mxu0 0.0
    %925 = vmatpush.msra.mxu0 0.0
    %926 = vmatpush.msra.mxu0 0.0
    %927 = vmatpush.msra.mxu0 %v907
    %928 = vmatmul.f32.gmra.mxu0 %v910
    %v929 = vpop.f32.mrf.mxu0
    %v930 = vadd.f32 0.0, %v929
    %931 = vdwg.mxu0
    %932 = vrot.lane.b32.xlu0 %v235, 96
    %v933 = vpop.permute.xlu0 %932
    %v936 = vsel %vm778, %v547, 0
    %938 = vmatpush.msra.mxu0 0.0
    %939 = vmatpush.msra.mxu0 0.0
    %940 = vmatpush.msra.mxu0 0.0
    %941 = vmatpush.msra.mxu0 0.0
    %942 = vmatpush.msra.mxu0 0.0
    %943 = vmatpush.msra.mxu0 0.0
    %944 = vmatpush.msra.mxu0 0.0
    %945 = vmatpush.msra.mxu0 0.0
    %946 = vmatpush.msra.mxu0 0.0
    %947 = vmatpush.msra.mxu0 0.0
    %948 = vmatpush.msra.mxu0 0.0
    %949 = vmatpush.msra.mxu0 0.0
    %950 = vmatpush.msra.mxu0 0.0
    %951 = vmatpush.msra.mxu0 0.0
    %952 = vmatpush.msra.mxu0 0.0
    %953 = vmatpush.msra.mxu0 %v933
    %954 = vmatmul.f32.gmra.mxu0 %v936
    %v955 = vpop.f32.mrf.mxu0
    %v956 = vadd.f32 0.0, %v955
    %957 = vdwg.mxu0
    %958 = vrot.lane.b32.xlu0 %v238, 96
    %v959 = vpop.permute.xlu0 %958
    %v962 = vsel %vm778, %v549, 0
    %964 = vmatpush.msra.mxu0 0.0
    %965 = vmatpush.msra.mxu0 0.0
    %966 = vmatpush.msra.mxu0 0.0
    %967 = vmatpush.msra.mxu0 0.0
    %968 = vmatpush.msra.mxu0 0.0
    %969 = vmatpush.msra.mxu0 0.0
    %970 = vmatpush.msra.mxu0 0.0
    %971 = vmatpush.msra.mxu0 0.0
    %972 = vmatpush.msra.mxu0 0.0
    %973 = vmatpush.msra.mxu0 0.0
    %974 = vmatpush.msra.mxu0 0.0
    %975 = vmatpush.msra.mxu0 0.0
    %976 = vmatpush.msra.mxu0 0.0
    %977 = vmatpush.msra.mxu0 0.0
    %978 = vmatpush.msra.mxu0 0.0
    %979 = vmatpush.msra.mxu0 %v959
    %980 = vmatmul.f32.gmra.mxu0 %v962
    %v981 = vpop.f32.mrf.mxu0
    %v982 = vadd.f32 0.0, %v981
    %983 = vdwg.mxu0
    %v984 = vadd.f32 %v767, %v800
    %v985 = vadd.f32 %v768, %v826
    %v986 = vadd.f32 %v769, %v852
    %v987 = vadd.f32 %v770, %v878
    %v988 = vadd.f32 %v771, %v904
    %v989 = vadd.f32 %v772, %v930
    %v990 = vadd.f32 %v773, %v956
    %v991 = vadd.f32 %v774, %v982
    %993 = vset.pattern.permute.xlu0 0
    %994 = vperm.xlu0 %993, %v619
    %v995 = vpop.permute.xlu0 %994
    %v997 = vperm.slane %v995, 0
    %999 = vset.pattern.permute.xlu0 0
    %1000 = vperm.xlu0 %999, %v633
    %v1001 = vpop.permute.xlu0 %1000
    %v1003 = vperm.slane %v1001, 0
    %1005 = vset.pattern.permute.xlu0 0
    %1006 = vperm.xlu0 %1005, %v647
    %v1007 = vpop.permute.xlu0 %1006
    %v1009 = vperm.slane %v1007, 0
    %1011 = vset.pattern.permute.xlu0 0
    %1012 = vperm.xlu0 %1011, %v661
    %v1013 = vpop.permute.xlu0 %1012
    %v1015 = vperm.slane %v1013, 0
    %1017 = vset.pattern.permute.xlu0 0
    %1018 = vperm.xlu0 %1017, %v675
    %v1019 = vpop.permute.xlu0 %1018
    %v1021 = vperm.slane %v1019, 0
    %1023 = vset.pattern.permute.xlu0 0
    %1024 = vperm.xlu0 %1023, %v689
    %v1025 = vpop.permute.xlu0 %1024
    %v1027 = vperm.slane %v1025, 0
    %1029 = vset.pattern.permute.xlu0 0
    %1030 = vperm.xlu0 %1029, %v703
    %v1031 = vpop.permute.xlu0 %1030
    %v1033 = vperm.slane %v1031, 0
    %1035 = vset.pattern.permute.xlu0 0
    %1036 = vperm.xlu0 %1035, %v717
    %v1037 = vpop.permute.xlu0 %1036
    %v1039 = vperm.slane %v1037, 0
    %v1040 = vmul.f32 %v984, %v997
    %v1041 = vmul.f32 %v985, %v1003
    %v1042 = vmul.f32 %v986, %v1009
    %v1043 = vmul.f32 %v987, %v1015
    %v1044 = vmul.f32 %v988, %v1021
    %v1045 = vmul.f32 %v989, %v1027
    %v1046 = vmul.f32 %v990, %v1033
    %v1047 = vmul.f32 %v991, %v1039
    %v1048 = vld [vmem:[%s10] sm:$0xff]
    %v1049 = vld [vmem:[%s10 + $0x8] sm:$0xff]
    %v1050 = vld [vmem:[%s10 + $0x10] sm:$0xff]
    %v1051 = vld [vmem:[%s10 + $0x18] sm:$0xff]
    %v1052 = vld [vmem:[%s11] sm:$0x1]
    %v1054 = vperm.slane %v1052, 0
    %1064 = vst [vmem:[#allocation1] ss:$9 sm:$0xff] %v1040
    %s1065 = scalar_lea.vmem [#allocation1], 1
    %1066 = vst [vmem:[%s1065] ss:$9 sm:$0xff] %v1041
    %s1067 = scalar_lea.vmem [#allocation1], 2
    %1068 = vst [vmem:[%s1067] ss:$9 sm:$0xff] %v1042
    %s1069 = scalar_lea.vmem [#allocation1], 3
    %1070 = vst [vmem:[%s1069] ss:$9 sm:$0xff] %v1043
    %s1071 = scalar_lea.vmem [#allocation1], 4
    %1072 = vst [vmem:[%s1071] ss:$9 sm:$0xff] %v1044
    %s1073 = scalar_lea.vmem [#allocation1], 5
    %1074 = vst [vmem:[%s1073] ss:$9 sm:$0xff] %v1045
    %s1075 = scalar_lea.vmem [#allocation1], 6
    %1076 = vst [vmem:[%s1075] ss:$9 sm:$0xff] %v1046
    %s1077 = scalar_lea.vmem [#allocation1], 7
    %1078 = vst [vmem:[%s1077] ss:$9 sm:$0xff] %v1047
    %v1079 = vld [vmem:[#allocation1] sm:$0xff]
    %v1080 = vsel %vm174, %v1079, 0
    %1082 = vmatpush.msra.mxu0 0.0
    %1083 = vmatpush.msra.mxu0 0.0
    %1084 = vmatpush.msra.mxu0 0.0
    %1085 = vmatpush.msra.mxu0 0.0
    %1086 = vmatpush.msra.mxu0 0.0
    %1087 = vmatpush.msra.mxu0 0.0
    %1088 = vmatpush.msra.mxu0 0.0
    %1089 = vmatpush.msra.mxu0 0.0
    %1090 = vmatpush.msra.mxu0 0.0
    %1091 = vmatpush.msra.mxu0 0.0
    %1092 = vmatpush.msra.mxu0 0.0
    %1093 = vmatpush.msra.mxu0 0.0
    %1094 = vmatpush.msra.mxu0 %v1051
    %1095 = vmatpush.msra.mxu0 %v1050
    %1096 = vmatpush.msra.mxu0 %v1049
    %1097 = vmatpush.msra.mxu0 %v1048
    %1098 = vmatmul.f32.gmra.mxu0 %v1080
    %v1099 = vpop.f32.mrf.mxu0
    %v1100 = vadd.f32 %v1054, %v1099
    %1101 = vdwg.mxu0
    %v1102 = vld [vmem:[%s3] sm:$0x1]
    %v1104 = vperm.slane %v1102, 0
    %v1106 = vadd.f32 %v1100, %v1104
    %v1107 = vld [vmem:[%s12] sm:$0x1]
    %v1108 = vld [vmem:[%s13] sm:$0x1]
    %v1109 = vsel %vm174, %v1106, 0.0
    %1110 = vadd.xlane.f32.xlu0 %v1109
    %v1111 = vpop.xlane.xlu0 %1110
    %v1112 = vrcp.pop 32.0
    %v1113 = vmul.f32 32.0, %v1112
    %v1114 = vsub.f32 1.0, %v1113
    %v1115 = vmul.f32 %v1112, %v1114
    %v1116 = vadd.f32 %v1112, %v1115
    %vm1117 = vweird.f32 %v1112
    %v1118 = vsel %vm1117, %v1112, %v1116
    %v1119 = vmul.f32 %v1111, %v1118
    %v1120 = vsub.f32 %v1106, %v1119
    %v1121 = vmul.f32 %v1120, %v1120
    %v1122 = vsel %vm174, %v1121, 0.0
    %1123 = vadd.xlane.f32.xlu0 %v1122
    %v1124 = vpop.xlane.xlu0 %1123
    %v1125 = vmul.f32 %v1124, %v1118
    %v1126 = vadd.f32 %v1125, 1e-05
    %v1127 = vrsqrt.pop %v1126
    %v1128 = vmul.f32 %v1127, %v1126
    %v1129 = vmul.f32 %v1128, %v1127
    %v1130 = vmul.f32 0.5, %v1129
    %v1131 = vsub.f32 1.5, %v1130
    %v1132 = vmul.f32 %v1127, %v1131
    %vm1133 = vweird.f32 %v1126
    %vm1134 = vweird.f32 %v1127
    %vm1135 = vmor %vm1133, %vm1134
    %v1136 = vsel %vm1135, %v1127, %v1132
    %v1137 = vmul.f32 %v1120, %v1136
    %v1139 = vperm.slane %v1107, 0
    %v1141 = vmul.f32 %v1137, %v1139
    %v1143 = vperm.slane %v1108, 0
    %v1145 = vadd.f32 %v1141, %v1143
    %v1146 = vld [vmem:[%s14] sm:$0xff]
    %v1147 = vld [vmem:[%s14 + $0x8] sm:$0xff]
    %v1148 = vld [vmem:[%s14 + $0x10] sm:$0xff]
    %v1149 = vld [vmem:[%s14 + $0x18] sm:$0xff]
    %v1150 = vld [vmem:[%s15] sm:$0x1]
    %v1152 = vperm.slane %v1150, 0
    %v1155 = vsel %vm174, %v1145, 0
    %1157 = vmatpush.msra.mxu0 0.0
    %1158 = vmatpush.msra.mxu0 0.0
    %1159 = vmatpush.msra.mxu0 0.0
    %1160 = vmatpush.msra.mxu0 0.0
    %1161 = vmatpush.msra.mxu0 0.0
    %1162 = vmatpush.msra.mxu0 0.0
    %1163 = vmatpush.msra.mxu0 0.0
    %1164 = vmatpush.msra.mxu0 0.0
    %1165 = vmatpush.msra.mxu0 0.0
    %1166 = vmatpush.msra.mxu0 0.0
    %1167 = vmatpush.msra.mxu0 0.0
    %1168 = vmatpush.msra.mxu0 0.0
    %1169 = vmatpush.msra.mxu0 %v1149
    %1170 = vmatpush.msra.mxu0 %v1148
    %1171 = vmatpush.msra.mxu0 %v1147
    %1172 = vmatpush.msra.mxu0 %v1146
    %1173 = vmatmul.f32.gmra.mxu0 %v1155
    %v1174 = vpop.f32.mrf.mxu0
    %v1175 = vadd.f32 %v1152, %v1174
    %1176 = vdwg.mxu0
    %v1177 = vmax.f32 %v1175, 0.0
    %v1178 = vld [vmem:[%s16] sm:$0xff]
    %v1179 = vld [vmem:[%s16 + $0x8] sm:$0xff]
    %v1180 = vld [vmem:[%s16 + $0x10] sm:$0xff]
    %v1181 = vld [vmem:[%s16 + $0x18] sm:$0xff]
    %v1182 = vld [vmem:[%s16 + $0x20] sm:$0xff]
    %v1183 = vld [vmem:[%s16 + $0x28] sm:$0xff]
    %v1184 = vld [vmem:[%s16 + $0x30] sm:$0xff]
    %v1185 = vld [vmem:[%s16 + $0x38] sm:$0xff]
    %v1186 = vld [vmem:[%s17] sm:$0x1]
    %v1188 = vperm.slane %v1186, 0
    %vm1190 = vcmask 523264
    %v1192 = vsel %vm1190, %v1177, 0
    %1194 = vmatpush.msra.mxu0 0.0
    %1195 = vmatpush.msra.mxu0 0.0
    %1196 = vmatpush.msra.mxu0 0.0
    %1197 = vmatpush.msra.mxu0 0.0
    %1198 = vmatpush.msra.mxu0 0.0
    %1199 = vmatpush.msra.mxu0 0.0
    %1200 = vmatpush.msra.mxu0 0.0
    %1201 = vmatpush.msra.mxu0 0.0
    %1202 = vmatpush.msra.mxu0 %v1185
    %1203 = vmatpush.msra.mxu0 %v1184
    %1204 = vmatpush.msra.mxu0 %v1183
    %1205 = vmatpush.msra.mxu0 %v1182
    %1206 = vmatpush.msra.mxu0 %v1181
    %1207 = vmatpush.msra.mxu0 %v1180
    %1208 = vmatpush.msra.mxu0 %v1179
    %1209 = vmatpush.msra.mxu0 %v1178
    %1210 = vmatmul.f32.gmra.mxu0 %v1192
    %v1211 = vpop.f32.mrf.mxu0
    %v1212 = vadd.f32 %v1188, %v1211
    %1213 = vdwg.mxu0
    %v1214 = vadd.f32 %v1212, %v1145
    %v1215 = vld [vmem:[%s18] sm:$0x1]
    %v1216 = vld [vmem:[%s19] sm:$0x1]
    %v1217 = vsel %vm174, %v1214, 0.0
    %1218 = vadd.xlane.f32.xlu0 %v1217
    %v1219 = vpop.xlane.xlu0 %1218
    %v1220 = vmul.f32 %v1219, %v1118
    %v1221 = vsub.f32 %v1214, %v1220
    %v1222 = vmul.f32 %v1221, %v1221
    %v1223 = vsel %vm174, %v1222, 0.0
    %1224 = vadd.xlane.f32.xlu0 %v1223
    %v1225 = vpop.xlane.xlu0 %1224
    %v1226 = vmul.f32 %v1225, %v1118
    %v1227 = vadd.f32 %v1226, 1e-05
    %v1228 = vrsqrt.pop %v1227
    %v1229 = vmul.f32 %v1228, %v1227
    %v1230 = vmul.f32 %v1229, %v1228
    %v1231 = vmul.f32 0.5, %v1230
    %v1232 = vsub.f32 1.5, %v1231
    %v1233 = vmul.f32 %v1228, %v1232
    %vm1234 = vweird.f32 %v1227
    %vm1235 = vweird.f32 %v1228
    %vm1236 = vmor %vm1234, %vm1235
    %v1237 = vsel %vm1236, %v1228, %v1233
    %v1238 = vmul.f32 %v1221, %v1237
    %v1240 = vperm.slane %v1215, 0
    %v1242 = vmul.f32 %v1238, %v1240
    %v1244 = vperm.slane %v1216, 0
    %v1246 = vadd.f32 %v1242, %v1244
    %v1247 = vld [vmem:[%s20] sm:$0xff]
    %v1248 = vld [vmem:[%s20 + $0x8] sm:$0xff]
    %v1249 = vld [vmem:[%s20 + $0x10] sm:$0xff]
    %v1250 = vld [vmem:[%s20 + $0x18] sm:$0xff]
    %v1251 = vld [vmem:[%s21] sm:$0x1]
    %v1253 = vperm.slane %v1251, 0
    %v1256 = vsel %vm174, %v1246, 0
    %1258 = vmatpush.msra.mxu0 0.0
    %1259 = vmatpush.msra.mxu0 0.0
    %1260 = vmatpush.msra.mxu0 0.0
    %1261 = vmatpush.msra.mxu0 0.0
    %1262 = vmatpush.msra.mxu0 0.0
    %1263 = vmatpush.msra.mxu0 0.0
    %1264 = vmatpush.msra.mxu0 0.0
    %1265 = vmatpush.msra.mxu0 0.0
    %1266 = vmatpush.msra.mxu0 0.0
    %1267 = vmatpush.msra.mxu0 0.0
    %1268 = vmatpush.msra.mxu0 0.0
    %1269 = vmatpush.msra.mxu0 0.0
    %1270 = vmatpush.msra.mxu0 %v1250
    %1271 = vmatpush.msra.mxu0 %v1249
    %1272 = vmatpush.msra.mxu0 %v1248
    %1273 = vmatpush.msra.mxu0 %v1247
    %1274 = vmatmul.f32.gmra.mxu0 %v1256
    %v1275 = vpop.f32.mrf.mxu0
    %v1276 = vadd.f32 %v1253, %v1275
    %1277 = vdwg.mxu0
    %v1278 = vmax.f32 %v1276, 0.0
    %v1279 = vld [vmem:[%s22] sm:$0xff]
    %v1280 = vld [vmem:[%s22 + $0x8] sm:$0xff]
    %v1281 = vld [vmem:[%s22 + $0x10] sm:$0xff]
    %v1282 = vld [vmem:[%s22 + $0x18] sm:$0xff]
    %v1283 = vld [vmem:[#allocation3] sm:$0x1]
    %v1285 = vperm.slane %v1283, 0
    %v1288 = vsel %vm174, %v1278, 0
    %1290 = vmatpush.msra.mxu0 0.0
    %1291 = vmatpush.msra.mxu0 0.0
    %1292 = vmatpush.msra.mxu0 0.0
    %1293 = vmatpush.msra.mxu0 0.0
    %1294 = vmatpush.msra.mxu0 0.0
    %1295 = vmatpush.msra.mxu0 0.0
    %1296 = vmatpush.msra.mxu0 0.0
    %1297 = vmatpush.msra.mxu0 0.0
    %1298 = vmatpush.msra.mxu0 0.0
    %1299 = vmatpush.msra.mxu0 0.0
    %1300 = vmatpush.msra.mxu0 0.0
    %1301 = vmatpush.msra.mxu0 0.0
    %1302 = vmatpush.msra.mxu0 %v1282
    %1303 = vmatpush.msra.mxu0 %v1281
    %1304 = vmatpush.msra.mxu0 %v1280
    %1305 = vmatpush.msra.mxu0 %v1279
    %1306 = vmatmul.f32.gmra.mxu0 %v1288
    %v1307 = vpop.f32.mrf.mxu0
    %v1308 = vadd.f32 %v1285, %v1307
    %1309 = vdwg.mxu0
    %v1310 = vld [vmem:[%s2] sm:$0xff]
    %1312 = vset.pattern.permute.xlu0 0
    %1313 = vperm.xlu0 %1312, %v1308
    %v1314 = vpop.permute.xlu0 %1313
    %v1316 = vmul.f32 %v1314, %v1310
    %1317 = vst.msk [vmem:[#allocation4] sm:$0xff] %vm778, %v1316
    // Predicated region
    $region98: #{tpu_custom_call.1} parent=1 // pred_check
      _
    $region99: #{tpu_custom_call.1} parent=1 // pred_check_branch
      %1319 = sbr.rel (0) target = $region101
    $region100: #{tpu_custom_call.1} parent=1 // pred_region
      %1321 = vsyncadd [#allocation5], 0
      %s1323 = sshll.u32 [#allocation4], 4
      %s1324 = int_to_ptr.vmem [resolvable:$true] %s1323
      %s1325 = sshll.u32 %s24, 4
      %s1326 = int_to_ptr.hbm [resolvable:$true] %s1325
      %1328 = dma.vmem_to_hbm [thread:$0]  %s1324, 128, %s1326, [#allocation5]
    $region101: #{tpu_custom_call.1} parent=1 // pred_fallthru
      _
    // Predicated region
    $region102: #{tpu_custom_call.1} parent=1 // pred_check
      _
    $region103: #{tpu_custom_call.1} parent=1 // pred_check_branch
      %1330 = sbr.rel (0) target = $region105
    $region104: #{tpu_custom_call.1} parent=1 // pred_region
      %1332 = dma.done [#allocation5], 128
    $region105: #{tpu_custom_call.1} parent=1 // pred_fallthru
      _
    %1333 = vsyncpa [#allocation5], 1

</llo_original>
